<compile_context>
chip_gen: v6e
topology: v6e:2x2x1
jax: 0.10.0
libtpu: 0.0.40
codegen_flags: <defaults>
</compile_context>

<pallas_src>
import jax
import jax.numpy as jnp
from jax.experimental import pallas as pl
from jax.experimental.pallas import tpu as pltpu

EXPANSION = 4
EPS = 1e-5
VMEM_LIMIT = 32 * 1024 * 1024     # explicit scoped-VMEM budget, safe on v5e/v6e/v7x


def _round_up(a, b):
    return (a + b - 1) // b * b


# ----------------------------- Pallas kernels -------------------------------

def _make_stage1_kernel(has_sc):
    """a0 = relu(bn1(x)); a1 = relu(a0 @ (w1*s2) + t2) [bf16]; sc = shortcut(a0)."""
    if has_sc:
        def kernel(x_ref, s1_ref, b1_ref, w1_ref, b2_ref, wsc_ref, a1_ref, sc_ref):
            a0 = jnp.maximum(x_ref[...] * s1_ref[...] + b1_ref[...], 0.0)
            a0b = a0.astype(jnp.bfloat16)
            h1 = jnp.dot(a0b, w1_ref[...], preferred_element_type=jnp.float32)
            a1_ref[...] = jnp.maximum(h1 + b2_ref[...], 0.0).astype(a1_ref.dtype)
            sc_ref[...] = jnp.dot(a0b, wsc_ref[...],
                                  preferred_element_type=jnp.float32)
    else:
        def kernel(x_ref, s1_ref, b1_ref, w1_ref, b2_ref, a1_ref, sc_ref):
            a0 = jnp.maximum(x_ref[...] * s1_ref[...] + b1_ref[...], 0.0)
            h1 = jnp.dot(a0.astype(jnp.bfloat16), w1_ref[...],
                         preferred_element_type=jnp.float32)
            a1_ref[...] = jnp.maximum(h1 + b2_ref[...], 0.0).astype(a1_ref.dtype)
            sc_ref[...] = a0      # identity shortcut (stride == 1, Cin == Cout)
    return kernel


def _make_tail_kernel(stride, TH, Wo, num_t):
    """3x3 conv (bn3 scale pre-folded) + bias + relu + 1x1 conv3 + residual add.

    Grid point (n, t): one batch element, one tile of TH output rows.  The padded
    bf16 activation block (1, H+2, W+2, P) is resident across t; it is upcast once
    into an f32 VMEM scratch and the 9 taps slice that scratch, accumulating into a
    second VMEM f32 scratch bounded to (TH*Wo, P).
    """
    rows = TH * Wo

    def kernel(a1p_ref, w2_ref, b3_ref, w3_ref, sc_ref, out_ref, a1f_ref, acc_ref):
        P = w2_ref.shape[1]
        # Upcast the bf16 HBM block once; tap slicing then happens on f32 in VMEM.
        a1f_ref[...] = a1p_ref[...].astype(jnp.float32)
        if num_t == 1:
            h0 = 0                                    # static path (demo)
        else:
            h0 = pl.program_id(1) * (TH * stride)     # first padded input row of tile
        for kh in range(3):
            for kw in range(3):
                if stride == 1:
                    idx_h = pl.ds(h0 + kh, TH)
                    idx_w = pl.ds(kw, Wo)
                else:
                    idx_h = pl.ds(h0 + kh, TH, stride=stride)
                    idx_w = pl.ds(kw, Wo, stride=stride)
                patch = a1f_ref[:, idx_h, idx_w, :]              # (1, TH, Wo, P)
                patch = patch.reshape(rows, P).astype(jnp.bfloat16)
                contrib = jnp.dot(patch, w2_ref[kh * 3 + kw],
                                  preferred_element_type=jnp.float32)
                if kh == 0 and kw == 0:
                    acc_ref[...] = contrib
                else:
                    acc_ref[...] += contrib
        a2 = jnp.maximum(acc_ref[...] + b3_ref[...], 0.0).astype(jnp.bfloat16)
        out = jnp.dot(a2, w3_ref[...], preferred_element_type=jnp.float32)
        out_ref[...] = (out + sc_ref[0]).reshape(out_ref.shape)
    return kernel


# ------------------------------ Wrapper --------------------------------------

def preact_bottleneck_forward(x_nchw, params, stride=1):
    N, Cin, H, W = x_nchw.shape
    P = params["w1"].shape[0]               # planes (conv1 weight is OIHW)
    Cout = EXPANSION * P
    has_sc = (stride != 1) or (Cin != Cout)
    f32, bf16 = jnp.float32, jnp.bfloat16

    # Fold BN (inference mode) into per-channel scale/bias: y = x*s + t
    def fold(prefix):
        g, b, rm, rv = (params[prefix + k].astype(f32) for k in ("g", "b", "rm", "rv"))
        s = g / jnp.sqrt(rv + EPS)
        return s, b - rm * s

    s1, t1 = fold("bn1_")
    s2, t2 = fold("bn2_")
    s3, t3 = fold("bn3_")

    # Conv weights OIHW -> channel-matmul layout, BN scales folded in, bf16 operands.
    w1f = (jnp.transpose(params["w1"][:, :, 0, 0], (1, 0)) * s2[None, :]).astype(bf16)   # (Cin, P)
    w2f = (jnp.transpose(params["w2"], (2, 3, 1, 0)) * s3[None, None, None, :]
           ).reshape(9, P, P).astype(bf16)                                               # (tap, Pin, Pout)
    w3f = jnp.transpose(params["w3"][:, :, 0, 0], (1, 0)).astype(bf16)                   # (P, Cout)

    x_nhwc = jnp.transpose(x_nchw, (0, 2, 3, 1)).astype(f32)
    M = N * H * W
    x2 = x_nhwc.reshape(M, Cin)

    # ---- Stage 1: bn1+relu, conv1(+bn2 scale)+bias+relu, fused shortcut -----
    TM = min(1024, _round_up(M, 16))        # large row tiles; 16-row multiple for bf16
    Mp = _round_up(M, TM)
    if Mp != M:
        x2 = jnp.pad(x2, ((0, Mp - M), (0, 0)))

    in_specs = [
        pl.BlockSpec((TM, Cin), lambda i: (i, 0)),
        pl.BlockSpec((1, Cin), lambda i: (0, 0)),
        pl.BlockSpec((1, Cin), lambda i: (0, 0)),
        pl.BlockSpec((Cin, P), lambda i: (0, 0)),
        pl.BlockSpec((1, P), lambda i: (0, 0)),
    ]
    args = [x2, s1.reshape(1, Cin), t1.reshape(1, Cin), w1f, t2.reshape(1, P)]
    if has_sc:
        wscf = jnp.transpose(params["wsc"][:, :, 0, 0], (1, 0)).astype(bf16)   # (Cin, Cout)
        in_specs.append(pl.BlockSpec((Cin, Cout), lambda i: (0, 0)))
        args.append(wscf)

    a1, sc = pl.pallas_call(
        _make_stage1_kernel(has_sc),
        grid=(Mp // TM,),
        in_specs=in_specs,
        out_specs=[pl.BlockSpec((TM, P), lambda i: (i, 0)),
                   pl.BlockSpec((TM, Cout), lambda i: (i, 0))],
        out_shape=[jax.ShapeDtypeStruct((Mp, P), bf16),     # bf16: halves a1 HBM traffic
                   jax.ShapeDtypeStruct((Mp, Cout), f32)],  # residual path kept f32
        compiler_params=pltpu.CompilerParams(
            dimension_semantics=("parallel",),
            vmem_limit_bytes=VMEM_LIMIT),
    )(*args)

    if Mp != M:
        a1, sc = a1[:M], sc[:M]

    Ho = (H - 1) // stride + 1
    Wo = (W - 1) // stride + 1

    # Shortcut: a strided 1x1 conv == the full-resolution 1x1 conv sampled at
    # strided positions, so just decimate the fused-stage-1 result.
    sc_nhwc = sc.reshape(N, H, W, Cout)
    if stride != 1:
        sc_nhwc = sc_nhwc[:, ::stride, ::stride, :]
    sc3 = sc_nhwc.reshape(N, Ho * Wo, Cout)

    # Zero-pad post-bn2-relu activations (bf16) for the 3x3 conv (kept host-side: a
    # single pass over the smallest activation; in-kernel halo handling not worth it).
    a1p = jnp.pad(a1.reshape(N, H, W, P), ((0, 0), (1, 1), (1, 1), (0, 0)))

    # ---- Stage 2: 3x3 conv + bias + relu + conv3 + residual add --------------
    TH = Ho                                   # spatial row tile: <= ~512 output rows
    while TH % 2 == 0 and TH * Wo > 512 and ((TH // 2) * Wo) % 8 == 0:
        TH //= 2
    num_t = Ho // TH

    out = pl.pallas_call(
        _make_tail_kernel(stride, TH, Wo, num_t),
        grid=(N, num_t),
        in_specs=[
            pl.BlockSpec((1, H + 2, W + 2, P), lambda n, t: (n, 0, 0, 0)),
            pl.BlockSpec((9, P, P), lambda n, t: (0, 0, 0)),
            pl.BlockSpec((1, P), lambda n, t: (0, 0)),
            pl.BlockSpec((P, Cout), lambda n, t: (0, 0)),
            pl.BlockSpec((1, TH * Wo, Cout), lambda n, t: (n, t, 0)),
        ],
        out_specs=pl.BlockSpec((1, TH * Wo, Cout), lambda n, t: (n, t, 0)),
        out_shape=jax.ShapeDtypeStruct((N, Ho * Wo, Cout), f32),
        scratch_shapes=[pltpu.VMEM((1, H + 2, W + 2, P), f32),   # f32 upcast of a1p block
                        pltpu.VMEM((TH * Wo, P), f32)],          # 3x3-conv accumulator
        compiler_params=pltpu.CompilerParams(
            dimension_semantics=("parallel", "parallel"),
            vmem_limit_bytes=VMEM_LIMIT),
    )(a1p, w2f, t3.reshape(1, P), w3f, sc3)

    out_nhwc = out.reshape(N, Ho, Wo, Cout)
    return jnp.transpose(out_nhwc, (0, 3, 1, 2))   # back to NCHW


# ----------------------- Pure-JAX reference (NCHW, f32) ----------------------

def reference_forward(x, params, stride=1):
    def bn(t, prefix):
        g = params[prefix + "g"][None, :, None, None]
        b = params[prefix + "b"][None, :, None, None]
        rm = params[prefix + "rm"][None, :, None, None]
        rv = params[prefix + "rv"][None, :, None, None]
        return (t - rm) / jnp.sqrt(rv + EPS) * g + b

    def conv(t, w, s=1, p=0):
        return jax.lax.conv_general_dilated(
            t, w, (s, s), [(p, p), (p, p)],
            dimension_numbers=("NCHW", "OIHW", "NCHW"))

    Cin = x.shape[1]
    Cout = params["w3"].shape[0]
    has_sc = (stride != 1) or (Cin != Cout)

    out = jax.nn.relu(bn(x, "bn1_"))
    shortcut = conv(out, params["wsc"], s=stride) if has_sc else out
    out = conv(out, params["w1"])
    out = conv(jax.nn.relu(bn(out, "bn2_")), params["w2"], s=stride, p=1)
    out = conv(jax.nn.relu(bn(out, "bn3_")), params["w3"])
    return out + shortcut


# ----------------------------- Param init ------------------------------------

def init_params(key, in_planes, planes):
    cout = EXPANSION * planes
    keys = jax.random.split(key, 8)
    p = {}

    def bn(prefix, c, k0):
        ks = jax.random.split(keys[k0], 4)
        p[prefix + "g"] = jax.random.uniform(ks[0], (c,), jnp.float32, 0.5, 1.5)
        p[prefix + "b"] = 0.1 * jax.random.normal(ks[1], (c,), jnp.float32)
        p[prefix + "rm"] = 0.1 * jax.random.normal(ks[2], (c,), jnp.float32)
        p[prefix + "rv"] = jax.random.uniform(ks[3], (c,), jnp.float32, 0.5, 1.5)

    bn("bn1_", in_planes, 0)
    bn("bn2_", planes, 1)
    bn("bn3_", planes, 2)
    p["w1"] = 0.3 * jax.random.normal(keys[3], (planes, in_planes, 1, 1), jnp.float32)
    p["w2"] = 0.2 * jax.random.normal(keys[4], (planes, planes, 3, 3), jnp.float32)
    p["w3"] = 0.3 * jax.random.normal(keys[5], (cout, planes, 1, 1), jnp.float32)
    p["wsc"] = 0.3 * jax.random.normal(keys[6], (cout, in_planes, 1, 1), jnp.float32)
    return p


if __name__ == "__main__":
    key = jax.random.PRNGKey(0)
    k_x, k_p = jax.random.split(key)

    N, in_planes, H, W = 2, 4, 16, 16
    planes, stride = 4, 1

    params = init_params(k_p, in_planes, planes)
    x = jax.random.normal(k_x, (N, in_planes, H, W), jnp.float32)

    out = preact_bottleneck_forward(x, params, stride=stride)
    out = jax.block_until_ready(out)

    ref = reference_forward(x, params, stride=stride)
    assert out.shape == ref.shape == (N, EXPANSION * planes, H, W), out.shape
    max_err = float(jnp.max(jnp.abs(out - ref)))
    # Tolerance accounts for bf16 matmul operands (f32 accumulation) vs f32 reference.
    assert jnp.allclose(out, ref, rtol=5e-2, atol=5e-2), max_err

    print("KERNEL_OK")
</pallas_src>

<mosaic_0001>
module attributes {stable_mosaic.version = 11 : i64} {
  func.func @kernel(%arg0: i32, %arg1: memref<512x4xf32, #tpu.memory_space<vmem>>, %arg2: memref<1x4xf32, #tpu.memory_space<vmem>>, %arg3: memref<1x4xf32, #tpu.memory_space<vmem>>, %arg4: memref<4x4xbf16, #tpu.memory_space<vmem>>, %arg5: memref<1x4xf32, #tpu.memory_space<vmem>>, %arg6: memref<4x16xbf16, #tpu.memory_space<vmem>>, %arg7: memref<512x4xbf16, #tpu.memory_space<vmem>>, %arg8: memref<512x16xf32, #tpu.memory_space<vmem>>) attributes {dimension_semantics = [#tpu.dimension_semantics<parallel>], iteration_bounds = array<i64: 1>, scalar_prefetch = 0 : i64, scratch_operands = 0 : i64, tpu.core_type = #tpu.core_type<tc>, window_params = [{transform_indices = @transform_0, window_bounds = array<i64: 512, 4>}, {pipeline_mode = #tpu.pipeline_mode<synchronous>, transform_indices = @transform_1, window_bounds = array<i64: 1, 4>}, {pipeline_mode = #tpu.pipeline_mode<synchronous>, transform_indices = @transform_2, window_bounds = array<i64: 1, 4>}, {pipeline_mode = #tpu.pipeline_mode<synchronous>, transform_indices = @transform_3, window_bounds = array<i64: 4, 4>}, {pipeline_mode = #tpu.pipeline_mode<synchronous>, transform_indices = @transform_4, window_bounds = array<i64: 1, 4>}, {pipeline_mode = #tpu.pipeline_mode<synchronous>, transform_indices = @transform_5, window_bounds = array<i64: 4, 16>}, {transform_indices = @transform_6, window_bounds = array<i64: 512, 4>}, {transform_indices = @transform_7, window_bounds = array<i64: 512, 16>}]} {
    %c0 = arith.constant 0 : index
    %c0_0 = arith.constant 0 : index
    %0 = vector.load %arg1[%c0, %c0_0] : memref<512x4xf32, #tpu.memory_space<vmem>>, vector<512x4xf32>
    %c0_1 = arith.constant 0 : index
    %c0_2 = arith.constant 0 : index
    %1 = vector.load %arg2[%c0_1, %c0_2] : memref<1x4xf32, #tpu.memory_space<vmem>>, vector<1x4xf32>
    %2 = vector.broadcast %1 : vector<1x4xf32> to vector<512x4xf32>
    %3 = arith.mulf %0, %2 : vector<512x4xf32>
    %c0_3 = arith.constant 0 : index
    %c0_4 = arith.constant 0 : index
    %4 = vector.load %arg3[%c0_3, %c0_4] : memref<1x4xf32, #tpu.memory_space<vmem>>, vector<1x4xf32>
    %5 = vector.broadcast %4 : vector<1x4xf32> to vector<512x4xf32>
    %6 = arith.addf %3, %5 : vector<512x4xf32>
    %cst = arith.constant 0.000000e+00 : f32
    %7 = vector.broadcast %cst : f32 to vector<512x4xf32>
    %8 = arith.maximumf %6, %7 : vector<512x4xf32>
    %9 = arith.truncf %8 : vector<512x4xf32> to vector<512x4xbf16>
    %c0_5 = arith.constant 0 : index
    %c0_6 = arith.constant 0 : index
    %10 = vector.load %arg4[%c0_5, %c0_6] : memref<4x4xbf16, #tpu.memory_space<vmem>>, vector<4x4xbf16>
    %cst_7 = arith.constant dense<0.000000e+00> : vector<512x4xf32>
    %11 = tpu.matmul %9, %10, %cst_7 {dimension_numbers = #tpu.dot_dimension_numbers<[1], [0], [0], [1], [0, 0, 1, 1], [], []>} : vector<512x4xbf16>, vector<4x4xbf16>, vector<512x4xf32> -> vector<512x4xf32>
    %c0_8 = arith.constant 0 : index
    %c0_9 = arith.constant 0 : index
    %12 = vector.load %arg5[%c0_8, %c0_9] : memref<1x4xf32, #tpu.memory_space<vmem>>, vector<1x4xf32>
    %13 = vector.broadcast %12 : vector<1x4xf32> to vector<512x4xf32>
    %14 = arith.addf %11, %13 : vector<512x4xf32>
    %cst_10 = arith.constant 0.000000e+00 : f32
    %15 = vector.broadcast %cst_10 : f32 to vector<512x4xf32>
    %16 = arith.maximumf %14, %15 : vector<512x4xf32>
    %17 = arith.truncf %16 : vector<512x4xf32> to vector<512x4xbf16>
    %c0_11 = arith.constant 0 : index
    %c0_12 = arith.constant 0 : index
    %18 = vector.load %arg7[%c0_11, %c0_12] : memref<512x4xbf16, #tpu.memory_space<vmem>>, vector<512x4xbf16>
    tpu.vector_store %arg7[%c0_11, %c0_12], %17 {strides = array<i32>} : memref<512x4xbf16, #tpu.memory_space<vmem>>, vector<512x4xbf16>,
    %c0_13 = arith.constant 0 : index
    %c0_14 = arith.constant 0 : index
    %19 = vector.load %arg6[%c0_13, %c0_14] : memref<4x16xbf16, #tpu.memory_space<vmem>>, vector<4x16xbf16>
    %cst_15 = arith.constant dense<0.000000e+00> : vector<512x16xf32>
    %20 = tpu.matmul %9, %19, %cst_15 {dimension_numbers = #tpu.dot_dimension_numbers<[1], [0], [0], [1], [0, 0, 1, 1], [], []>} : vector<512x4xbf16>, vector<4x16xbf16>, vector<512x16xf32> -> vector<512x16xf32>
    %c0_16 = arith.constant 0 : index
    %c0_17 = arith.constant 0 : index
    %21 = vector.load %arg8[%c0_16, %c0_17] : memref<512x16xf32, #tpu.memory_space<vmem>>, vector<512x16xf32>
    tpu.vector_store %arg8[%c0_16, %c0_17], %20 {strides = array<i32>} : memref<512x16xf32, #tpu.memory_space<vmem>>, vector<512x16xf32>,
    return
  }
  func.func @transform_0(%arg0: i32) -> (i32, i32) {
    %c0_i32 = arith.constant 0 : i32
    %c0_i32_0 = arith.constant 0 : i32
    return %arg0, %c0_i32 : i32, i32
  }
  func.func @transform_1(%arg0: i32) -> (i32, i32) {
    %c0_i32 = arith.constant 0 : i32
    %c0_i32_0 = arith.constant 0 : i32
    %c0_i32_1 = arith.constant 0 : i32
    return %c0_i32, %c0_i32_0 : i32, i32
  }
  func.func @transform_2(%arg0: i32) -> (i32, i32) {
    %c0_i32 = arith.constant 0 : i32
    %c0_i32_0 = arith.constant 0 : i32
    %c0_i32_1 = arith.constant 0 : i32
    return %c0_i32, %c0_i32_0 : i32, i32
  }
  func.func @transform_3(%arg0: i32) -> (i32, i32) {
    %c0_i32 = arith.constant 0 : i32
    %c0_i32_0 = arith.constant 0 : i32
    %c0_i32_1 = arith.constant 0 : i32
    return %c0_i32, %c0_i32_0 : i32, i32
  }
  func.func @transform_4(%arg0: i32) -> (i32, i32) {
    %c0_i32 = arith.constant 0 : i32
    %c0_i32_0 = arith.constant 0 : i32
    %c0_i32_1 = arith.constant 0 : i32
    return %c0_i32, %c0_i32_0 : i32, i32
  }
  func.func @transform_5(%arg0: i32) -> (i32, i32) {
    %c0_i32 = arith.constant 0 : i32
    %c0_i32_0 = arith.constant 0 : i32
    %c0_i32_1 = arith.constant 0 : i32
    return %c0_i32, %c0_i32_0 : i32, i32
  }
  func.func @transform_6(%arg0: i32) -> (i32, i32) {
    %c0_i32 = arith.constant 0 : i32
    %c0_i32_0 = arith.constant 0 : i32
    return %arg0, %c0_i32 : i32, i32
  }
  func.func @transform_7(%arg0: i32) -> (i32, i32) {
    %c0_i32 = arith.constant 0 : i32
    %c0_i32_0 = arith.constant 0 : i32
    return %arg0, %c0_i32 : i32, i32
  }
}

</mosaic_0001>

<llo_original>
// kernel: tpu_custom_call.1
$region0: #{tpu_custom_call.1}
  #allocation0 [shape = 'u32[]', space=smem, size = 0x4, offset = 0x4, fixed_abs, tag = 'smem constant byte address 0x4 - core index']
  #allocation1 [shape = 'u32[144,128]{1,0:T(1,128)}', space=vmem, size = 0x12000, scoped, tag = 'internal scratch']
  %s0 = inlined_call_operand.vmem [shape: f32[512,4], index: 0, kind: input, shape index: {}]
  %s1 = inlined_call_operand.vmem [shape: f32[1,4], index: 1, kind: input, shape index: {}]
  %s2 = inlined_call_operand.vmem [shape: f32[1,4], index: 2, kind: input, shape index: {}]
  %s3 = inlined_call_operand.vmem [shape: bf16[4,4], index: 3, kind: input, shape index: {}]
  %s4 = inlined_call_operand.vmem [shape: f32[1,4], index: 4, kind: input, shape index: {}]
  %s5 = inlined_call_operand.vmem [shape: bf16[4,16], index: 5, kind: input, shape index: {}]
  %s6 = inlined_call_operand.vmem [shape: bf16[512,4], index: 6, kind: output, shape index: {0}]
  %s7 = inlined_call_operand.vmem [shape: f32[512,16], index: 7, kind: output, shape index: {1}]
  %8 = xla_tuple %s6, %s7
  %s9 = sld [smem:[#allocation0]]
  $region42: #{tpu_custom_call.1} parent=0
    _
  %s11 = ssub.s32 1, %s9
  %s12 = scalar_select 0, %s11, %s9
  // Predicated region
  $region2: #{tpu_custom_call.1} parent=0 // pred_check
    _
  $region3: #{tpu_custom_call.1} parent=0 // pred_check_branch
    %14 = sbr.rel (0) target = $region5
  $region4: #{tpu_custom_call.1} parent=0 // pred_region
    _
  $region5: #{tpu_custom_call.1} parent=0 // pred_fallthru
    _
  // Predicated region
  $region6: #{tpu_custom_call.1} parent=0 // pred_check
    _
  $region7: #{tpu_custom_call.1} parent=0 // pred_check_branch
    %16 = sbr.rel (0) target = $region9
  $region8: #{tpu_custom_call.1} parent=0 // pred_region
    _
  $region9: #{tpu_custom_call.1} parent=0 // pred_fallthru
    _
  // Predicated region
  $region10: #{tpu_custom_call.1} parent=0 // pred_check
    _
  $region11: #{tpu_custom_call.1} parent=0 // pred_check_branch
    %18 = sbr.rel (0) target = $region13
  $region12: #{tpu_custom_call.1} parent=0 // pred_region
    _
  $region13: #{tpu_custom_call.1} parent=0 // pred_fallthru
    _
  // Predicated region
  $region14: #{tpu_custom_call.1} parent=0 // pred_check
    _
  $region15: #{tpu_custom_call.1} parent=0 // pred_check_branch
    %20 = sbr.rel (0) target = $region17
  $region16: #{tpu_custom_call.1} parent=0 // pred_region
    _
  $region17: #{tpu_custom_call.1} parent=0 // pred_fallthru
    _
  // Predicated region
  $region18: #{tpu_custom_call.1} parent=0 // pred_check
    _
  $region19: #{tpu_custom_call.1} parent=0 // pred_check_branch
    %22 = sbr.rel (0) target = $region21
  $region20: #{tpu_custom_call.1} parent=0 // pred_region
    _
  $region21: #{tpu_custom_call.1} parent=0 // pred_fallthru
    _
  // Predicated region
  $region22: #{tpu_custom_call.1} parent=0 // pred_check
    _
  $region23: #{tpu_custom_call.1} parent=0 // pred_check_branch
    %24 = sbr.rel (0) target = $region25
  $region24: #{tpu_custom_call.1} parent=0 // pred_region
    _
  $region25: #{tpu_custom_call.1} parent=0 // pred_fallthru
    _
  %v26 = vld [vmem:[%s0] sm:$0xff]
  %v27 = vld [vmem:[%s0 + $0x8] sm:$0xff]
  %v28 = vld [vmem:[%s0 + $0x10] sm:$0xff]
  %v29 = vld [vmem:[%s0 + $0x18] sm:$0xff]
  %v30 = vld [vmem:[%s0 + $0x20] sm:$0xff]
  %v31 = vld [vmem:[%s0 + $0x28] sm:$0xff]
  %v32 = vld [vmem:[%s0 + $0x30] sm:$0xff]
  %v33 = vld [vmem:[%s0 + $0x38] sm:$0xff]
  %v34 = vld [vmem:[%s0 + $0x40] sm:$0xff]
  %v35 = vld [vmem:[%s0 + $0x48] sm:$0xff]
  %v36 = vld [vmem:[%s0 + $0x50] sm:$0xff]
  %v37 = vld [vmem:[%s0 + $0x58] sm:$0xff]
  %v38 = vld [vmem:[%s0 + $0x60] sm:$0xff]
  %v39 = vld [vmem:[%s0 + $0x68] sm:$0xff]
  %v40 = vld [vmem:[%s0 + $0x70] sm:$0xff]
  %v41 = vld [vmem:[%s0 + $0x78] sm:$0xff]
  %v42 = vld [vmem:[%s0 + $0x80] sm:$0xff]
  %v43 = vld [vmem:[%s0 + $0x88] sm:$0xff]
  %v44 = vld [vmem:[%s0 + $0x90] sm:$0xff]
  %v45 = vld [vmem:[%s0 + $0x98] sm:$0xff]
  %v46 = vld [vmem:[%s0 + $0xa0] sm:$0xff]
  %v47 = vld [vmem:[%s0 + $0xa8] sm:$0xff]
  %v48 = vld [vmem:[%s0 + $0xb0] sm:$0xff]
  %v49 = vld [vmem:[%s0 + $0xb8] sm:$0xff]
  %v50 = vld [vmem:[%s0 + $0xc0] sm:$0xff]
  %v51 = vld [vmem:[%s0 + $0xc8] sm:$0xff]
  %v52 = vld [vmem:[%s0 + $0xd0] sm:$0xff]
  %v53 = vld [vmem:[%s0 + $0xd8] sm:$0xff]
  %v54 = vld [vmem:[%s0 + $0xe0] sm:$0xff]
  %v55 = vld [vmem:[%s0 + $0xe8] sm:$0xff]
  %v56 = vld [vmem:[%s0 + $0xf0] sm:$0xff]
  %v57 = vld [vmem:[%s0 + $0xf8] sm:$0xff]
  %v58 = vld [vmem:[%s0 + $0x100] sm:$0xff]
  %v59 = vld [vmem:[%s0 + $0x108] sm:$0xff]
  %v60 = vld [vmem:[%s0 + $0x110] sm:$0xff]
  %v61 = vld [vmem:[%s0 + $0x118] sm:$0xff]
  %v62 = vld [vmem:[%s0 + $0x120] sm:$0xff]
  %v63 = vld [vmem:[%s0 + $0x128] sm:$0xff]
  %v64 = vld [vmem:[%s0 + $0x130] sm:$0xff]
  %v65 = vld [vmem:[%s0 + $0x138] sm:$0xff]
  %v66 = vld [vmem:[%s0 + $0x140] sm:$0xff]
  %v67 = vld [vmem:[%s0 + $0x148] sm:$0xff]
  %v68 = vld [vmem:[%s0 + $0x150] sm:$0xff]
  %v69 = vld [vmem:[%s0 + $0x158] sm:$0xff]
  %v70 = vld [vmem:[%s0 + $0x160] sm:$0xff]
  %v71 = vld [vmem:[%s0 + $0x168] sm:$0xff]
  %v72 = vld [vmem:[%s0 + $0x170] sm:$0xff]
  %v73 = vld [vmem:[%s0 + $0x178] sm:$0xff]
  %v74 = vld [vmem:[%s0 + $0x180] sm:$0xff]
  %v75 = vld [vmem:[%s0 + $0x188] sm:$0xff]
  %v76 = vld [vmem:[%s0 + $0x190] sm:$0xff]
  %v77 = vld [vmem:[%s0 + $0x198] sm:$0xff]
  %v78 = vld [vmem:[%s0 + $0x1a0] sm:$0xff]
  %v79 = vld [vmem:[%s0 + $0x1a8] sm:$0xff]
  %v80 = vld [vmem:[%s0 + $0x1b0] sm:$0xff]
  %v81 = vld [vmem:[%s0 + $0x1b8] sm:$0xff]
  %v82 = vld [vmem:[%s0 + $0x1c0] sm:$0xff]
  %v83 = vld [vmem:[%s0 + $0x1c8] sm:$0xff]
  %v84 = vld [vmem:[%s0 + $0x1d0] sm:$0xff]
  %v85 = vld [vmem:[%s0 + $0x1d8] sm:$0xff]
  %v86 = vld [vmem:[%s0 + $0x1e0] sm:$0xff]
  %v87 = vld [vmem:[%s0 + $0x1e8] sm:$0xff]
  %v88 = vld [vmem:[%s0 + $0x1f0] sm:$0xff]
  %v89 = vld [vmem:[%s0 + $0x1f8] sm:$0xff]
  %v90 = vld [vmem:[%s1] sm:$0x1]
  %v92 = vlaneseq
  %v93 = vshrl.u32 %v92, 7
  %v94 = vsub.s32 0, %v93
  %v95 = vrot.slane %v90, %v94
  %v97 = vmul.f32 %v26, %v95
  %v98 = vmul.f32 %v27, %v95
  %v99 = vmul.f32 %v28, %v95
  %v100 = vmul.f32 %v29, %v95
  %v101 = vmul.f32 %v30, %v95
  %v102 = vmul.f32 %v31, %v95
  %v103 = vmul.f32 %v32, %v95
  %v104 = vmul.f32 %v33, %v95
  %v105 = vmul.f32 %v34, %v95
  %v106 = vmul.f32 %v35, %v95
  %v107 = vmul.f32 %v36, %v95
  %v108 = vmul.f32 %v37, %v95
  %v109 = vmul.f32 %v38, %v95
  %v110 = vmul.f32 %v39, %v95
  %v111 = vmul.f32 %v40, %v95
  %v112 = vmul.f32 %v41, %v95
  %v113 = vmul.f32 %v42, %v95
  %v114 = vmul.f32 %v43, %v95
  %v115 = vmul.f32 %v44, %v95
  %v116 = vmul.f32 %v45, %v95
  %v117 = vmul.f32 %v46, %v95
  %v118 = vmul.f32 %v47, %v95
  %v119 = vmul.f32 %v48, %v95
  %v120 = vmul.f32 %v49, %v95
  %v121 = vmul.f32 %v50, %v95
  %v122 = vmul.f32 %v51, %v95
  %v123 = vmul.f32 %v52, %v95
  %v124 = vmul.f32 %v53, %v95
  %v125 = vmul.f32 %v54, %v95
  %v126 = vmul.f32 %v55, %v95
  %v127 = vmul.f32 %v56, %v95
  %v128 = vmul.f32 %v57, %v95
  %v129 = vmul.f32 %v58, %v95
  %v130 = vmul.f32 %v59, %v95
  %v131 = vmul.f32 %v60, %v95
  %v132 = vmul.f32 %v61, %v95
  %v133 = vmul.f32 %v62, %v95
  %v134 = vmul.f32 %v63, %v95
  %v135 = vmul.f32 %v64, %v95
  %v136 = vmul.f32 %v65, %v95
  %v137 = vmul.f32 %v66, %v95
  %v138 = vmul.f32 %v67, %v95
  %v139 = vmul.f32 %v68, %v95
  %v140 = vmul.f32 %v69, %v95
  %v141 = vmul.f32 %v70, %v95
  %v142 = vmul.f32 %v71, %v95
  %v143 = vmul.f32 %v72, %v95
  %v144 = vmul.f32 %v73, %v95
  %v145 = vmul.f32 %v74, %v95
  %v146 = vmul.f32 %v75, %v95
  %v147 = vmul.f32 %v76, %v95
  %v148 = vmul.f32 %v77, %v95
  %v149 = vmul.f32 %v78, %v95
  %v150 = vmul.f32 %v79, %v95
  %v151 = vmul.f32 %v80, %v95
  %v152 = vmul.f32 %v81, %v95
  %v153 = vmul.f32 %v82, %v95
  %v154 = vmul.f32 %v83, %v95
  %v155 = vmul.f32 %v84, %v95
  %v156 = vmul.f32 %v85, %v95
  %v157 = vmul.f32 %v86, %v95
  %v158 = vmul.f32 %v87, %v95
  %v159 = vmul.f32 %v88, %v95
  %v160 = vmul.f32 %v89, %v95
  %v161 = vld [vmem:[%s2] sm:$0x1]
  %v163 = vlaneseq
  %v164 = vshrl.u32 %v163, 7
  %v165 = vsub.s32 0, %v164
  %v166 = vrot.slane %v161, %v165
  %v168 = vadd.f32 %v97, %v166
  %v169 = vadd.f32 %v98, %v166
  %v170 = vadd.f32 %v99, %v166
  %v171 = vadd.f32 %v100, %v166
  %v172 = vadd.f32 %v101, %v166
  %v173 = vadd.f32 %v102, %v166
  %v174 = vadd.f32 %v103, %v166
  %v175 = vadd.f32 %v104, %v166
  %v176 = vadd.f32 %v105, %v166
  %v177 = vadd.f32 %v106, %v166
  %v178 = vadd.f32 %v107, %v166
  %v179 = vadd.f32 %v108, %v166
  %v180 = vadd.f32 %v109, %v166
  %v181 = vadd.f32 %v110, %v166
  %v182 = vadd.f32 %v111, %v166
  %v183 = vadd.f32 %v112, %v166
  %v184 = vadd.f32 %v113, %v166
  %v185 = vadd.f32 %v114, %v166
  %v186 = vadd.f32 %v115, %v166
  %v187 = vadd.f32 %v116, %v166
  %v188 = vadd.f32 %v117, %v166
  %v189 = vadd.f32 %v118, %v166
  %v190 = vadd.f32 %v119, %v166
  %v191 = vadd.f32 %v120, %v166
  %v192 = vadd.f32 %v121, %v166
  %v193 = vadd.f32 %v122, %v166
  %v194 = vadd.f32 %v123, %v166
  %v195 = vadd.f32 %v124, %v166
  %v196 = vadd.f32 %v125, %v166
  %v197 = vadd.f32 %v126, %v166
  %v198 = vadd.f32 %v127, %v166
  %v199 = vadd.f32 %v128, %v166
  %v200 = vadd.f32 %v129, %v166
  %v201 = vadd.f32 %v130, %v166
  %v202 = vadd.f32 %v131, %v166
  %v203 = vadd.f32 %v132, %v166
  %v204 = vadd.f32 %v133, %v166
  %v205 = vadd.f32 %v134, %v166
  %v206 = vadd.f32 %v135, %v166
  %v207 = vadd.f32 %v136, %v166
  %v208 = vadd.f32 %v137, %v166
  %v209 = vadd.f32 %v138, %v166
  %v210 = vadd.f32 %v139, %v166
  %v211 = vadd.f32 %v140, %v166
  %v212 = vadd.f32 %v141, %v166
  %v213 = vadd.f32 %v142, %v166
  %v214 = vadd.f32 %v143, %v166
  %v215 = vadd.f32 %v144, %v166
  %v216 = vadd.f32 %v145, %v166
  %v217 = vadd.f32 %v146, %v166
  %v218 = vadd.f32 %v147, %v166
  %v219 = vadd.f32 %v148, %v166
  %v220 = vadd.f32 %v149, %v166
  %v221 = vadd.f32 %v150, %v166
  %v222 = vadd.f32 %v151, %v166
  %v223 = vadd.f32 %v152, %v166
  %v224 = vadd.f32 %v153, %v166
  %v225 = vadd.f32 %v154, %v166
  %v226 = vadd.f32 %v155, %v166
  %v227 = vadd.f32 %v156, %v166
  %v228 = vadd.f32 %v157, %v166
  %v229 = vadd.f32 %v158, %v166
  %v230 = vadd.f32 %v159, %v166
  %v231 = vadd.f32 %v160, %v166
  %v232 = vmax.f32 %v168, 0.0
  %v233 = vmax.f32 %v169, 0.0
  %v234 = vmax.f32 %v170, 0.0
  %v235 = vmax.f32 %v171, 0.0
  %v236 = vmax.f32 %v172, 0.0
  %v237 = vmax.f32 %v173, 0.0
  %v238 = vmax.f32 %v174, 0.0
  %v239 = vmax.f32 %v175, 0.0
  %v240 = vmax.f32 %v176, 0.0
  %v241 = vmax.f32 %v177, 0.0
  %v242 = vmax.f32 %v178, 0.0
  %v243 = vmax.f32 %v179, 0.0
  %v244 = vmax.f32 %v180, 0.0
  %v245 = vmax.f32 %v181, 0.0
  %v246 = vmax.f32 %v182, 0.0
  %v247 = vmax.f32 %v183, 0.0
  %v248 = vmax.f32 %v184, 0.0
  %v249 = vmax.f32 %v185, 0.0
  %v250 = vmax.f32 %v186, 0.0
  %v251 = vmax.f32 %v187, 0.0
  %v252 = vmax.f32 %v188, 0.0
  %v253 = vmax.f32 %v189, 0.0
  %v254 = vmax.f32 %v190, 0.0
  %v255 = vmax.f32 %v191, 0.0
  %v256 = vmax.f32 %v192, 0.0
  %v257 = vmax.f32 %v193, 0.0
  %v258 = vmax.f32 %v194, 0.0
  %v259 = vmax.f32 %v195, 0.0
  %v260 = vmax.f32 %v196, 0.0
  %v261 = vmax.f32 %v197, 0.0
  %v262 = vmax.f32 %v198, 0.0
  %v263 = vmax.f32 %v199, 0.0
  %v264 = vmax.f32 %v200, 0.0
  %v265 = vmax.f32 %v201, 0.0
  %v266 = vmax.f32 %v202, 0.0
  %v267 = vmax.f32 %v203, 0.0
  %v268 = vmax.f32 %v204, 0.0
  %v269 = vmax.f32 %v205, 0.0
  %v270 = vmax.f32 %v206, 0.0
  %v271 = vmax.f32 %v207, 0.0
  %v272 = vmax.f32 %v208, 0.0
  %v273 = vmax.f32 %v209, 0.0
  %v274 = vmax.f32 %v210, 0.0
  %v275 = vmax.f32 %v211, 0.0
  %v276 = vmax.f32 %v212, 0.0
  %v277 = vmax.f32 %v213, 0.0
  %v278 = vmax.f32 %v214, 0.0
  %v279 = vmax.f32 %v215, 0.0
  %v280 = vmax.f32 %v216, 0.0
  %v281 = vmax.f32 %v217, 0.0
  %v282 = vmax.f32 %v218, 0.0
  %v283 = vmax.f32 %v219, 0.0
  %v284 = vmax.f32 %v220, 0.0
  %v285 = vmax.f32 %v221, 0.0
  %v286 = vmax.f32 %v222, 0.0
  %v287 = vmax.f32 %v223, 0.0
  %v288 = vmax.f32 %v224, 0.0
  %v289 = vmax.f32 %v225, 0.0
  %v290 = vmax.f32 %v226, 0.0
  %v291 = vmax.f32 %v227, 0.0
  %v292 = vmax.f32 %v228, 0.0
  %v293 = vmax.f32 %v229, 0.0
  %v294 = vmax.f32 %v230, 0.0
  %v295 = vmax.f32 %v231, 0.0
  %v296 = vpack.c.bf16 %v233, %v232
  %v297 = vpack.c.bf16 %v235, %v234
  %v298 = vpack.c.bf16 %v237, %v236
  %v299 = vpack.c.bf16 %v239, %v238
  %v300 = vpack.c.bf16 %v241, %v240
  %v301 = vpack.c.bf16 %v243, %v242
  %v302 = vpack.c.bf16 %v245, %v244
  %v303 = vpack.c.bf16 %v247, %v246
  %v304 = vpack.c.bf16 %v249, %v248
  %v305 = vpack.c.bf16 %v251, %v250
  %v306 = vpack.c.bf16 %v253, %v252
  %v307 = vpack.c.bf16 %v255, %v254
  %v308 = vpack.c.bf16 %v257, %v256
  %v309 = vpack.c.bf16 %v259, %v258
  %v310 = vpack.c.bf16 %v261, %v260
  %v311 = vpack.c.bf16 %v263, %v262
  %v312 = vpack.c.bf16 %v265, %v264
  %v313 = vpack.c.bf16 %v267, %v266
  %v314 = vpack.c.bf16 %v269, %v268
  %v315 = vpack.c.bf16 %v271, %v270
  %v316 = vpack.c.bf16 %v273, %v272
  %v317 = vpack.c.bf16 %v275, %v274
  %v318 = vpack.c.bf16 %v277, %v276
  %v319 = vpack.c.bf16 %v279, %v278
  %v320 = vpack.c.bf16 %v281, %v280
  %v321 = vpack.c.bf16 %v283, %v282
  %v322 = vpack.c.bf16 %v285, %v284
  %v323 = vpack.c.bf16 %v287, %v286
  %v324 = vpack.c.bf16 %v289, %v288
  %v325 = vpack.c.bf16 %v291, %v290
  %v326 = vpack.c.bf16 %v293, %v292
  %v327 = vpack.c.bf16 %v295, %v294
  %v328 = vld [vmem:[%s3] sm:$0x3]
  %v329 = vld [vmem:[%s4] sm:$0x1]
  %v331 = vlaneseq
  %v332 = vshrl.u32 %v331, 7
  %v333 = vsub.s32 0, %v332
  %v334 = vrot.slane %v329, %v333
  %vm336 = vcmask 31744
  %v338 = vsel %vm336, %v296, 0
  %v341 = vsel %vm336, %v297, 0
  %v344 = vsel %vm336, %v298, 0
  %v347 = vsel %vm336, %v299, 0
  %v350 = vsel %vm336, %v300, 0
  %v353 = vsel %vm336, %v301, 0
  %v356 = vsel %vm336, %v302, 0
  %v359 = vsel %vm336, %v303, 0
  %v362 = vsel %vm336, %v304, 0
  %v365 = vsel %vm336, %v305, 0
  %v368 = vsel %vm336, %v306, 0
  %v371 = vsel %vm336, %v307, 0
  %v374 = vsel %vm336, %v308, 0
  %v377 = vsel %vm336, %v309, 0
  %v380 = vsel %vm336, %v310, 0
  %v383 = vsel %vm336, %v311, 0
  %v386 = vsel %vm336, %v312, 0
  %v389 = vsel %vm336, %v313, 0
  %v392 = vsel %vm336, %v314, 0
  %v395 = vsel %vm336, %v315, 0
  %v398 = vsel %vm336, %v316, 0
  %v401 = vsel %vm336, %v317, 0
  %v404 = vsel %vm336, %v318, 0
  %v407 = vsel %vm336, %v319, 0
  %v410 = vsel %vm336, %v320, 0
  %v413 = vsel %vm336, %v321, 0
  %v416 = vsel %vm336, %v322, 0
  %v419 = vsel %vm336, %v323, 0
  %v422 = vsel %vm336, %v324, 0
  %v425 = vsel %vm336, %v325, 0
  %v428 = vsel %vm336, %v326, 0
  %v431 = vsel %vm336, %v327, 0
  %vm433 = vcmask 1041408
  %v435 = vsel %vm433, %v328, 0
  %437 = vmatprep.subr.bf16.mxu0 0
  %438 = vmatpush1.bf16.msra.mxu0 0
  %439 = vmatprep.subr.bf16.mxu0 0
  %440 = vmatpush1.bf16.msra.mxu0 0
  %441 = vmatprep.subr.bf16.mxu0 0
  %442 = vmatpush1.bf16.msra.mxu0 0
  %443 = vmatprep.subr.bf16.mxu0 0
  %444 = vmatpush1.bf16.msra.mxu0 0
  %445 = vmatprep.subr.bf16.mxu0 0
  %446 = vmatpush1.bf16.msra.mxu0 0
  %447 = vmatprep.subr.bf16.mxu0 0
  %448 = vmatpush1.bf16.msra.mxu0 0
  %449 = vmatprep.subr.bf16.mxu0 0
  %450 = vmatpush1.bf16.msra.mxu0 0
  %451 = vmatprep.subr.bf16.mxu0 0
  %452 = vmatpush1.bf16.msra.mxu0 %v435
  %453 = vmatprep.subr.bf16.mxu0 0
  %454 = vmatpush2.bf16.msra.mxu0 0
  %455 = vmatprep.subr.bf16.mxu0 0
  %456 = vmatpush2.bf16.msra.mxu0 0
  %457 = vmatprep.subr.bf16.mxu0 0
  %458 = vmatpush2.bf16.msra.mxu0 0
  %459 = vmatprep.subr.bf16.mxu0 0
  %460 = vmatpush2.bf16.msra.mxu0 0
  %461 = vmatprep.subr.bf16.mxu0 0
  %462 = vmatpush2.bf16.msra.mxu0 0
  %463 = vmatprep.subr.bf16.mxu0 0
  %464 = vmatpush2.bf16.msra.mxu0 0
  %465 = vmatprep.subr.bf16.mxu0 0
  %466 = vmatpush2.bf16.msra.mxu0 0
  %467 = vmatprep.subr.bf16.mxu0 0
  %468 = vmatpush2.bf16.msra.mxu0 0
  %469 = vmatprep.mubr.bf16.mxu0 0
  %470 = vmatmul.mubr.bf16.gmra.mxu0 %v338
  %v471 = vpop.f32.mrf.mxu0
  %v472 = vadd.f32 %v334, %v471
  %v473 = vpop.f32.mrf.mxu0
  %v474 = vpop.f32.mrf.mxu0
  %v475 = vadd.f32 %v334, %v474
  %v476 = vpop.f32.mrf.mxu0
  %477 = vmatprep.mubr.bf16.mxu0 0
  %478 = vmatmul.mubr.bf16.gmra.mxu0 %v341
  %v479 = vpop.f32.mrf.mxu0
  %v480 = vadd.f32 %v334, %v479
  %v481 = vpop.f32.mrf.mxu0
  %v482 = vpop.f32.mrf.mxu0
  %v483 = vadd.f32 %v334, %v482
  %v484 = vpop.f32.mrf.mxu0
  %485 = vmatprep.mubr.bf16.mxu0 0
  %486 = vmatmul.mubr.bf16.gmra.mxu0 %v344
  %v487 = vpop.f32.mrf.mxu0
  %v488 = vadd.f32 %v334, %v487
  %v489 = vpop.f32.mrf.mxu0
  %v490 = vpop.f32.mrf.mxu0
  %v491 = vadd.f32 %v334, %v490
  %v492 = vpop.f32.mrf.mxu0
  %493 = vmatprep.mubr.bf16.mxu0 0
  %494 = vmatmul.mubr.bf16.gmra.mxu0 %v347
  %v495 = vpop.f32.mrf.mxu0
  %v496 = vadd.f32 %v334, %v495
  %v497 = vpop.f32.mrf.mxu0
  %v498 = vpop.f32.mrf.mxu0
  %v499 = vadd.f32 %v334, %v498
  %v500 = vpop.f32.mrf.mxu0
  %501 = vmatprep.mubr.bf16.mxu0 0
  %502 = vmatmul.mubr.bf16.gmra.mxu0 %v350
  %v503 = vpop.f32.mrf.mxu0
  %v504 = vadd.f32 %v334, %v503
  %v505 = vpop.f32.mrf.mxu0
  %v506 = vpop.f32.mrf.mxu0
  %v507 = vadd.f32 %v334, %v506
  %v508 = vpop.f32.mrf.mxu0
  %509 = vmatprep.mubr.bf16.mxu0 0
  %510 = vmatmul.mubr.bf16.gmra.mxu0 %v353
  %v511 = vpop.f32.mrf.mxu0
  %v512 = vadd.f32 %v334, %v511
  %v513 = vpop.f32.mrf.mxu0
  %v514 = vpop.f32.mrf.mxu0
  %v515 = vadd.f32 %v334, %v514
  %v516 = vpop.f32.mrf.mxu0
  %517 = vmatprep.mubr.bf16.mxu0 0
  %518 = vmatmul.mubr.bf16.gmra.mxu0 %v356
  %v519 = vpop.f32.mrf.mxu0
  %v520 = vadd.f32 %v334, %v519
  %v521 = vpop.f32.mrf.mxu0
  %v522 = vpop.f32.mrf.mxu0
  %v523 = vadd.f32 %v334, %v522
  %v524 = vpop.f32.mrf.mxu0
  %525 = vmatprep.mubr.bf16.mxu0 0
  %526 = vmatmul.mubr.bf16.gmra.mxu0 %v359
  %v527 = vpop.f32.mrf.mxu0
  %v528 = vadd.f32 %v334, %v527
  %v529 = vpop.f32.mrf.mxu0
  %v530 = vpop.f32.mrf.mxu0
  %v531 = vadd.f32 %v334, %v530
  %v532 = vpop.f32.mrf.mxu0
  %533 = vmatprep.mubr.bf16.mxu0 0
  %534 = vmatmul.mubr.bf16.gmra.mxu0 %v362
  %v535 = vpop.f32.mrf.mxu0
  %v536 = vadd.f32 %v334, %v535
  %v537 = vpop.f32.mrf.mxu0
  %v538 = vpop.f32.mrf.mxu0
  %v539 = vadd.f32 %v334, %v538
  %v540 = vpop.f32.mrf.mxu0
  %541 = vmatprep.mubr.bf16.mxu0 0
  %542 = vmatmul.mubr.bf16.gmra.mxu0 %v365
  %v543 = vpop.f32.mrf.mxu0
  %v544 = vadd.f32 %v334, %v543
  %v545 = vpop.f32.mrf.mxu0
  %v546 = vpop.f32.mrf.mxu0
  %v547 = vadd.f32 %v334, %v546
  %v548 = vpop.f32.mrf.mxu0
  %549 = vmatprep.mubr.bf16.mxu0 0
  %550 = vmatmul.mubr.bf16.gmra.mxu0 %v368
  %v551 = vpop.f32.mrf.mxu0
  %v552 = vadd.f32 %v334, %v551
  %v553 = vpop.f32.mrf.mxu0
  %v554 = vpop.f32.mrf.mxu0
  %v555 = vadd.f32 %v334, %v554
  %v556 = vpop.f32.mrf.mxu0
  %557 = vmatprep.mubr.bf16.mxu0 0
  %558 = vmatmul.mubr.bf16.gmra.mxu0 %v371
  %v559 = vpop.f32.mrf.mxu0
  %v560 = vadd.f32 %v334, %v559
  %v561 = vpop.f32.mrf.mxu0
  %v562 = vpop.f32.mrf.mxu0
  %v563 = vadd.f32 %v334, %v562
  %v564 = vpop.f32.mrf.mxu0
  %565 = vmatprep.mubr.bf16.mxu0 0
  %566 = vmatmul.mubr.bf16.gmra.mxu0 %v374
  %v567 = vpop.f32.mrf.mxu0
  %v568 = vadd.f32 %v334, %v567
  %v569 = vpop.f32.mrf.mxu0
  %v570 = vpop.f32.mrf.mxu0
  %v571 = vadd.f32 %v334, %v570
  %v572 = vpop.f32.mrf.mxu0
  %573 = vmatprep.mubr.bf16.mxu0 0
  %574 = vmatmul.mubr.bf16.gmra.mxu0 %v377
  %v575 = vpop.f32.mrf.mxu0
  %v576 = vadd.f32 %v334, %v575
  %v577 = vpop.f32.mrf.mxu0
  %v578 = vpop.f32.mrf.mxu0
  %v579 = vadd.f32 %v334, %v578
  %v580 = vpop.f32.mrf.mxu0
  %581 = vmatprep.mubr.bf16.mxu0 0
  %582 = vmatmul.mubr.bf16.gmra.mxu0 %v380
  %v583 = vpop.f32.mrf.mxu0
  %v584 = vadd.f32 %v334, %v583
  %v585 = vpop.f32.mrf.mxu0
  %v586 = vpop.f32.mrf.mxu0
  %v587 = vadd.f32 %v334, %v586
  %v588 = vpop.f32.mrf.mxu0
  %589 = vmatprep.mubr.bf16.mxu0 0
  %590 = vmatmul.mubr.bf16.gmra.mxu0 %v383
  %v591 = vpop.f32.mrf.mxu0
  %v592 = vadd.f32 %v334, %v591
  %v593 = vpop.f32.mrf.mxu0
  %v594 = vpop.f32.mrf.mxu0
  %v595 = vadd.f32 %v334, %v594
  %v596 = vpop.f32.mrf.mxu0
  %597 = vmatprep.mubr.bf16.mxu0 0
  %598 = vmatmul.mubr.bf16.gmra.mxu0 %v386
  %v599 = vpop.f32.mrf.mxu0
  %v600 = vadd.f32 %v334, %v599
  %v601 = vpop.f32.mrf.mxu0
  %v602 = vpop.f32.mrf.mxu0
  %v603 = vadd.f32 %v334, %v602
  %v604 = vpop.f32.mrf.mxu0
  %605 = vmatprep.mubr.bf16.mxu0 0
  %606 = vmatmul.mubr.bf16.gmra.mxu0 %v389
  %v607 = vpop.f32.mrf.mxu0
  %v608 = vadd.f32 %v334, %v607
  %v609 = vpop.f32.mrf.mxu0
  %v610 = vpop.f32.mrf.mxu0
  %v611 = vadd.f32 %v334, %v610
  %v612 = vpop.f32.mrf.mxu0
  %613 = vmatprep.mubr.bf16.mxu0 0
  %614 = vmatmul.mubr.bf16.gmra.mxu0 %v392
  %v615 = vpop.f32.mrf.mxu0
  %v616 = vadd.f32 %v334, %v615
  %v617 = vpop.f32.mrf.mxu0
  %v618 = vpop.f32.mrf.mxu0
  %v619 = vadd.f32 %v334, %v618
  %v620 = vpop.f32.mrf.mxu0
  %621 = vmatprep.mubr.bf16.mxu0 0
  %622 = vmatmul.mubr.bf16.gmra.mxu0 %v395
  %v623 = vpop.f32.mrf.mxu0
  %v624 = vadd.f32 %v334, %v623
  %v625 = vpop.f32.mrf.mxu0
  %v626 = vpop.f32.mrf.mxu0
  %v627 = vadd.f32 %v334, %v626
  %v628 = vpop.f32.mrf.mxu0
  %629 = vmatprep.mubr.bf16.mxu0 0
  %630 = vmatmul.mubr.bf16.gmra.mxu0 %v398
  %v631 = vpop.f32.mrf.mxu0
  %v632 = vadd.f32 %v334, %v631
  %v633 = vpop.f32.mrf.mxu0
  %v634 = vpop.f32.mrf.mxu0
  %v635 = vadd.f32 %v334, %v634
  %v636 = vpop.f32.mrf.mxu0
  %637 = vmatprep.mubr.bf16.mxu0 0
  %638 = vmatmul.mubr.bf16.gmra.mxu0 %v401
  %v639 = vpop.f32.mrf.mxu0
  %v640 = vadd.f32 %v334, %v639
  %v641 = vpop.f32.mrf.mxu0
  %v642 = vpop.f32.mrf.mxu0
  %v643 = vadd.f32 %v334, %v642
  %v644 = vpop.f32.mrf.mxu0
  %645 = vmatprep.mubr.bf16.mxu0 0
  %646 = vmatmul.mubr.bf16.gmra.mxu0 %v404
  %v647 = vpop.f32.mrf.mxu0
  %v648 = vadd.f32 %v334, %v647
  %v649 = vpop.f32.mrf.mxu0
  %v650 = vpop.f32.mrf.mxu0
  %v651 = vadd.f32 %v334, %v650
  %v652 = vpop.f32.mrf.mxu0
  %653 = vmatprep.mubr.bf16.mxu0 0
  %654 = vmatmul.mubr.bf16.gmra.mxu0 %v407
  %v655 = vpop.f32.mrf.mxu0
  %v656 = vadd.f32 %v334, %v655
  %v657 = vpop.f32.mrf.mxu0
  %v658 = vpop.f32.mrf.mxu0
  %v659 = vadd.f32 %v334, %v658
  %v660 = vpop.f32.mrf.mxu0
  %661 = vmatprep.mubr.bf16.mxu0 0
  %662 = vmatmul.mubr.bf16.gmra.mxu0 %v410
  %v663 = vpop.f32.mrf.mxu0
  %v664 = vadd.f32 %v334, %v663
  %v665 = vpop.f32.mrf.mxu0
  %v666 = vpop.f32.mrf.mxu0
  %v667 = vadd.f32 %v334, %v666
  %v668 = vpop.f32.mrf.mxu0
  %669 = vmatprep.mubr.bf16.mxu0 0
  %670 = vmatmul.mubr.bf16.gmra.mxu0 %v413
  %v671 = vpop.f32.mrf.mxu0
  %v672 = vadd.f32 %v334, %v671
  %v673 = vpop.f32.mrf.mxu0
  %v674 = vpop.f32.mrf.mxu0
  %v675 = vadd.f32 %v334, %v674
  %v676 = vpop.f32.mrf.mxu0
  %677 = vmatprep.mubr.bf16.mxu0 0
  %678 = vmatmul.mubr.bf16.gmra.mxu0 %v416
  %v679 = vpop.f32.mrf.mxu0
  %v680 = vadd.f32 %v334, %v679
  %v681 = vpop.f32.mrf.mxu0
  %v682 = vpop.f32.mrf.mxu0
  %v683 = vadd.f32 %v334, %v682
  %v684 = vpop.f32.mrf.mxu0
  %685 = vmatprep.mubr.bf16.mxu0 0
  %686 = vmatmul.mubr.bf16.gmra.mxu0 %v419
  %v687 = vpop.f32.mrf.mxu0
  %v688 = vadd.f32 %v334, %v687
  %v689 = vpop.f32.mrf.mxu0
  %v690 = vpop.f32.mrf.mxu0
  %v691 = vadd.f32 %v334, %v690
  %v692 = vpop.f32.mrf.mxu0
  %693 = vmatprep.mubr.bf16.mxu0 0
  %694 = vmatmul.mubr.bf16.gmra.mxu0 %v422
  %v695 = vpop.f32.mrf.mxu0
  %v696 = vadd.f32 %v334, %v695
  %v697 = vpop.f32.mrf.mxu0
  %v698 = vpop.f32.mrf.mxu0
  %v699 = vadd.f32 %v334, %v698
  %v700 = vpop.f32.mrf.mxu0
  %701 = vmatprep.mubr.bf16.mxu0 0
  %702 = vmatmul.mubr.bf16.gmra.mxu0 %v425
  %v703 = vpop.f32.mrf.mxu0
  %v704 = vadd.f32 %v334, %v703
  %v705 = vpop.f32.mrf.mxu0
  %v706 = vpop.f32.mrf.mxu0
  %v707 = vadd.f32 %v334, %v706
  %v708 = vpop.f32.mrf.mxu0
  %709 = vmatprep.mubr.bf16.mxu0 0
  %710 = vmatmul.mubr.bf16.gmra.mxu0 %v428
  %v711 = vpop.f32.mrf.mxu0
  %v712 = vadd.f32 %v334, %v711
  %v713 = vpop.f32.mrf.mxu0
  %v714 = vpop.f32.mrf.mxu0
  %v715 = vadd.f32 %v334, %v714
  %v716 = vpop.f32.mrf.mxu0
  %717 = vmatprep.mubr.bf16.mxu0 0
  %718 = vmatmul.mubr.bf16.gmra.mxu0 %v431
  %v719 = vpop.f32.mrf.mxu0
  %v720 = vadd.f32 %v334, %v719
  %v721 = vpop.f32.mrf.mxu0
  %v722 = vpop.f32.mrf.mxu0
  %v723 = vadd.f32 %v334, %v722
  %v724 = vpop.f32.mrf.mxu0
  %725 = vdwg.mxu0
  %v726 = vmax.f32 %v472, 0.0
  %v727 = vmax.f32 %v475, 0.0
  %v728 = vmax.f32 %v480, 0.0
  %v729 = vmax.f32 %v483, 0.0
  %v730 = vmax.f32 %v488, 0.0
  %v731 = vmax.f32 %v491, 0.0
  %v732 = vmax.f32 %v496, 0.0
  %v733 = vmax.f32 %v499, 0.0
  %v734 = vmax.f32 %v504, 0.0
  %v735 = vmax.f32 %v507, 0.0
  %v736 = vmax.f32 %v512, 0.0
  %v737 = vmax.f32 %v515, 0.0
  %v738 = vmax.f32 %v520, 0.0
  %v739 = vmax.f32 %v523, 0.0
  %v740 = vmax.f32 %v528, 0.0
  %v741 = vmax.f32 %v531, 0.0
  %v742 = vmax.f32 %v536, 0.0
  %v743 = vmax.f32 %v539, 0.0
  %v744 = vmax.f32 %v544, 0.0
  %v745 = vmax.f32 %v547, 0.0
  %v746 = vmax.f32 %v552, 0.0
  %v747 = vmax.f32 %v555, 0.0
  %v748 = vmax.f32 %v560, 0.0
  %v749 = vmax.f32 %v563, 0.0
  %v750 = vmax.f32 %v568, 0.0
  %v751 = vmax.f32 %v571, 0.0
  %v752 = vmax.f32 %v576, 0.0
  %v753 = vmax.f32 %v579, 0.0
  %v754 = vmax.f32 %v584, 0.0
  %v755 = vmax.f32 %v587, 0.0
  %v756 = vmax.f32 %v592, 0.0
  %v757 = vmax.f32 %v595, 0.0
  %v758 = vmax.f32 %v600, 0.0
  %v759 = vmax.f32 %v603, 0.0
  %v760 = vmax.f32 %v608, 0.0
  %v761 = vmax.f32 %v611, 0.0
  %v762 = vmax.f32 %v616, 0.0
  %v763 = vmax.f32 %v619, 0.0
  %v764 = vmax.f32 %v624, 0.0
  %v765 = vmax.f32 %v627, 0.0
  %v766 = vmax.f32 %v632, 0.0
  %v767 = vmax.f32 %v635, 0.0
  %v768 = vmax.f32 %v640, 0.0
  %v769 = vmax.f32 %v643, 0.0
  %v770 = vmax.f32 %v648, 0.0
  %v771 = vmax.f32 %v651, 0.0
  %v772 = vmax.f32 %v656, 0.0
  %v773 = vmax.f32 %v659, 0.0
  %v774 = vmax.f32 %v664, 0.0
  %v775 = vmax.f32 %v667, 0.0
  %v776 = vmax.f32 %v672, 0.0
  %v777 = vmax.f32 %v675, 0.0
  %v778 = vmax.f32 %v680, 0.0
  %v779 = vmax.f32 %v683, 0.0
  %v780 = vmax.f32 %v688, 0.0
  %v781 = vmax.f32 %v691, 0.0
  %v782 = vmax.f32 %v696, 0.0
  %v783 = vmax.f32 %v699, 0.0
  %v784 = vmax.f32 %v704, 0.0
  %v785 = vmax.f32 %v707, 0.0
  %v786 = vmax.f32 %v712, 0.0
  %v787 = vmax.f32 %v715, 0.0
  %v788 = vmax.f32 %v720, 0.0
  %v789 = vmax.f32 %v723, 0.0
  %v790 = vpack.c.bf16 %v727, %v726
  %v791 = vpack.c.bf16 %v729, %v728
  %v792 = vpack.c.bf16 %v731, %v730
  %v793 = vpack.c.bf16 %v733, %v732
  %v794 = vpack.c.bf16 %v735, %v734
  %v795 = vpack.c.bf16 %v737, %v736
  %v796 = vpack.c.bf16 %v739, %v738
  %v797 = vpack.c.bf16 %v741, %v740
  %v798 = vpack.c.bf16 %v743, %v742
  %v799 = vpack.c.bf16 %v745, %v744
  %v800 = vpack.c.bf16 %v747, %v746
  %v801 = vpack.c.bf16 %v749, %v748
  %v802 = vpack.c.bf16 %v751, %v750
  %v803 = vpack.c.bf16 %v753, %v752
  %v804 = vpack.c.bf16 %v755, %v754
  %v805 = vpack.c.bf16 %v757, %v756
  %v806 = vpack.c.bf16 %v759, %v758
  %v807 = vpack.c.bf16 %v761, %v760
  %v808 = vpack.c.bf16 %v763, %v762
  %v809 = vpack.c.bf16 %v765, %v764
  %v810 = vpack.c.bf16 %v767, %v766
  %v811 = vpack.c.bf16 %v769, %v768
  %v812 = vpack.c.bf16 %v771, %v770
  %v813 = vpack.c.bf16 %v773, %v772
  %v814 = vpack.c.bf16 %v775, %v774
  %v815 = vpack.c.bf16 %v777, %v776
  %v816 = vpack.c.bf16 %v779, %v778
  %v817 = vpack.c.bf16 %v781, %v780
  %v818 = vpack.c.bf16 %v783, %v782
  %v819 = vpack.c.bf16 %v785, %v784
  %v820 = vpack.c.bf16 %v787, %v786
  %v821 = vpack.c.bf16 %v789, %v788
  %v854 = vunpack.c.l.b16 %v790
  %v855 = vunpack.c.h.b16 %v790
  %v856 = vunpack.c.l.b16 %v791
  %v857 = vunpack.c.h.b16 %v791
  %v858 = vunpack.c.l.b16 %v792
  %v859 = vunpack.c.h.b16 %v792
  %v860 = vunpack.c.l.b16 %v793
  %v861 = vunpack.c.h.b16 %v793
  %v862 = vunpack.c.l.b16 %v794
  %v863 = vunpack.c.h.b16 %v794
  %v864 = vunpack.c.l.b16 %v795
  %v865 = vunpack.c.h.b16 %v795
  %v866 = vunpack.c.l.b16 %v796
  %v867 = vunpack.c.h.b16 %v796
  %v868 = vunpack.c.l.b16 %v797
  %v869 = vunpack.c.h.b16 %v797
  %v870 = vunpack.c.l.b16 %v798
  %v871 = vunpack.c.h.b16 %v798
  %v872 = vunpack.c.l.b16 %v799
  %v873 = vunpack.c.h.b16 %v799
  %v874 = vunpack.c.l.b16 %v800
  %v875 = vunpack.c.h.b16 %v800
  %v876 = vunpack.c.l.b16 %v801
  %v877 = vunpack.c.h.b16 %v801
  %v878 = vunpack.c.l.b16 %v802
  %v879 = vunpack.c.h.b16 %v802
  %v880 = vunpack.c.l.b16 %v803
  %v881 = vunpack.c.h.b16 %v803
  %v882 = vunpack.c.l.b16 %v804
  %v883 = vunpack.c.h.b16 %v804
  %v884 = vunpack.c.l.b16 %v805
  %v885 = vunpack.c.h.b16 %v805
  %v886 = vunpack.c.l.b16 %v806
  %v887 = vunpack.c.h.b16 %v806
  %v888 = vunpack.c.l.b16 %v807
  %v889 = vunpack.c.h.b16 %v807
  %v890 = vunpack.c.l.b16 %v808
  %v891 = vunpack.c.h.b16 %v808
  %v892 = vunpack.c.l.b16 %v809
  %v893 = vunpack.c.h.b16 %v809
  %v894 = vunpack.c.l.b16 %v810
  %v895 = vunpack.c.h.b16 %v810
  %v896 = vunpack.c.l.b16 %v811
  %v897 = vunpack.c.h.b16 %v811
  %v898 = vunpack.c.l.b16 %v812
  %v899 = vunpack.c.h.b16 %v812
  %v900 = vunpack.c.l.b16 %v813
  %v901 = vunpack.c.h.b16 %v813
  %v902 = vunpack.c.l.b16 %v814
  %v903 = vunpack.c.h.b16 %v814
  %v904 = vunpack.c.l.b16 %v815
  %v905 = vunpack.c.h.b16 %v815
  %v906 = vunpack.c.l.b16 %v816
  %v907 = vunpack.c.h.b16 %v816
  %v908 = vunpack.c.l.b16 %v817
  %v909 = vunpack.c.h.b16 %v817
  %v910 = vunpack.c.l.b16 %v818
  %v911 = vunpack.c.h.b16 %v818
  %v912 = vunpack.c.l.b16 %v819
  %v913 = vunpack.c.h.b16 %v819
  %v914 = vunpack.c.l.b16 %v820
  %v915 = vunpack.c.h.b16 %v820
  %v916 = vunpack.c.l.b16 %v821
  %v917 = vunpack.c.h.b16 %v821
  %v918 = vpack.c.b16 %v854, %v854
  %v919 = vpack.c.b16 %v855, %v855
  %v920 = vpack.c.b16 %v856, %v856
  %v921 = vpack.c.b16 %v857, %v857
  %v922 = vpack.c.b16 %v858, %v858
  %v923 = vpack.c.b16 %v859, %v859
  %v924 = vpack.c.b16 %v860, %v860
  %v925 = vpack.c.b16 %v861, %v861
  %v926 = vpack.c.b16 %v862, %v862
  %v927 = vpack.c.b16 %v863, %v863
  %v928 = vpack.c.b16 %v864, %v864
  %v929 = vpack.c.b16 %v865, %v865
  %v930 = vpack.c.b16 %v866, %v866
  %v931 = vpack.c.b16 %v867, %v867
  %v932 = vpack.c.b16 %v868, %v868
  %v933 = vpack.c.b16 %v869, %v869
  %v934 = vpack.c.b16 %v870, %v870
  %v935 = vpack.c.b16 %v871, %v871
  %v936 = vpack.c.b16 %v872, %v872
  %v937 = vpack.c.b16 %v873, %v873
  %v938 = vpack.c.b16 %v874, %v874
  %v939 = vpack.c.b16 %v875, %v875
  %v940 = vpack.c.b16 %v876, %v876
  %v941 = vpack.c.b16 %v877, %v877
  %v942 = vpack.c.b16 %v878, %v878
  %v943 = vpack.c.b16 %v879, %v879
  %v944 = vpack.c.b16 %v880, %v880
  %v945 = vpack.c.b16 %v881, %v881
  %v946 = vpack.c.b16 %v882, %v882
  %v947 = vpack.c.b16 %v883, %v883
  %v948 = vpack.c.b16 %v884, %v884
  %v949 = vpack.c.b16 %v885, %v885
  %v950 = vpack.c.b16 %v886, %v886
  %v951 = vpack.c.b16 %v887, %v887
  %v952 = vpack.c.b16 %v888, %v888
  %v953 = vpack.c.b16 %v889, %v889
  %v954 = vpack.c.b16 %v890, %v890
  %v955 = vpack.c.b16 %v891, %v891
  %v956 = vpack.c.b16 %v892, %v892
  %v957 = vpack.c.b16 %v893, %v893
  %v958 = vpack.c.b16 %v894, %v894
  %v959 = vpack.c.b16 %v895, %v895
  %v960 = vpack.c.b16 %v896, %v896
  %v961 = vpack.c.b16 %v897, %v897
  %v962 = vpack.c.b16 %v898, %v898
  %v963 = vpack.c.b16 %v899, %v899
  %v964 = vpack.c.b16 %v900, %v900
  %v965 = vpack.c.b16 %v901, %v901
  %v966 = vpack.c.b16 %v902, %v902
  %v967 = vpack.c.b16 %v903, %v903
  %v968 = vpack.c.b16 %v904, %v904
  %v969 = vpack.c.b16 %v905, %v905
  %v970 = vpack.c.b16 %v906, %v906
  %v971 = vpack.c.b16 %v907, %v907
  %v972 = vpack.c.b16 %v908, %v908
  %v973 = vpack.c.b16 %v909, %v909
  %v974 = vpack.c.b16 %v910, %v910
  %v975 = vpack.c.b16 %v911, %v911
  %v976 = vpack.c.b16 %v912, %v912
  %v977 = vpack.c.b16 %v913, %v913
  %v978 = vpack.c.b16 %v914, %v914
  %v979 = vpack.c.b16 %v915, %v915
  %v980 = vpack.c.b16 %v916, %v916
  %v981 = vpack.c.b16 %v917, %v917
  %vm1046 = vcmask 27648
  %1047 = vst.msk [vmem:[%s6] sm:$0xf] %vm1046, %v918
  %1048 = vst.msk [vmem:[%s6 + $0x4] sm:$0xf] %vm1046, %v919
  %1049 = vst.msk [vmem:[%s6 + $0x8] sm:$0xf] %vm1046, %v920
  %1050 = vst.msk [vmem:[%s6 + $0xc] sm:$0xf] %vm1046, %v921
  %1051 = vst.msk [vmem:[%s6 + $0x10] sm:$0xf] %vm1046, %v922
  %1052 = vst.msk [vmem:[%s6 + $0x14] sm:$0xf] %vm1046, %v923
  %1053 = vst.msk [vmem:[%s6 + $0x18] sm:$0xf] %vm1046, %v924
  %1054 = vst.msk [vmem:[%s6 + $0x1c] sm:$0xf] %vm1046, %v925
  %1055 = vst.msk [vmem:[%s6 + $0x20] sm:$0xf] %vm1046, %v926
  %1056 = vst.msk [vmem:[%s6 + $0x24] sm:$0xf] %vm1046, %v927
  %1057 = vst.msk [vmem:[%s6 + $0x28] sm:$0xf] %vm1046, %v928
  %1058 = vst.msk [vmem:[%s6 + $0x2c] sm:$0xf] %vm1046, %v929
  %1059 = vst.msk [vmem:[%s6 + $0x30] sm:$0xf] %vm1046, %v930
  %1060 = vst.msk [vmem:[%s6 + $0x34] sm:$0xf] %vm1046, %v931
  %1061 = vst.msk [vmem:[%s6 + $0x38] sm:$0xf] %vm1046, %v932
  %1062 = vst.msk [vmem:[%s6 + $0x3c] sm:$0xf] %vm1046, %v933
  %1063 = vst.msk [vmem:[%s6 + $0x40] sm:$0xf] %vm1046, %v934
  %1064 = vst.msk [vmem:[%s6 + $0x44] sm:$0xf] %vm1046, %v935
  %1065 = vst.msk [vmem:[%s6 + $0x48] sm:$0xf] %vm1046, %v936
  %1066 = vst.msk [vmem:[%s6 + $0x4c] sm:$0xf] %vm1046, %v937
  %1067 = vst.msk [vmem:[%s6 + $0x50] sm:$0xf] %vm1046, %v938
  %1068 = vst.msk [vmem:[%s6 + $0x54] sm:$0xf] %vm1046, %v939
  %1069 = vst.msk [vmem:[%s6 + $0x58] sm:$0xf] %vm1046, %v940
  %1070 = vst.msk [vmem:[%s6 + $0x5c] sm:$0xf] %vm1046, %v941
  %1071 = vst.msk [vmem:[%s6 + $0x60] sm:$0xf] %vm1046, %v942
  %1072 = vst.msk [vmem:[%s6 + $0x64] sm:$0xf] %vm1046, %v943
  %1073 = vst.msk [vmem:[%s6 + $0x68] sm:$0xf] %vm1046, %v944
  %1074 = vst.msk [vmem:[%s6 + $0x6c] sm:$0xf] %vm1046, %v945
  %1075 = vst.msk [vmem:[%s6 + $0x70] sm:$0xf] %vm1046, %v946
  %1076 = vst.msk [vmem:[%s6 + $0x74] sm:$0xf] %vm1046, %v947
  %1077 = vst.msk [vmem:[%s6 + $0x78] sm:$0xf] %vm1046, %v948
  %1078 = vst.msk [vmem:[%s6 + $0x7c] sm:$0xf] %vm1046, %v949
  %1079 = vst.msk [vmem:[%s6 + $0x80] sm:$0xf] %vm1046, %v950
  %1080 = vst.msk [vmem:[%s6 + $0x84] sm:$0xf] %vm1046, %v951
  %1081 = vst.msk [vmem:[%s6 + $0x88] sm:$0xf] %vm1046, %v952
  %1082 = vst.msk [vmem:[%s6 + $0x8c] sm:$0xf] %vm1046, %v953
  %1083 = vst.msk [vmem:[%s6 + $0x90] sm:$0xf] %vm1046, %v954
  %1084 = vst.msk [vmem:[%s6 + $0x94] sm:$0xf] %vm1046, %v955
  %1085 = vst.msk [vmem:[%s6 + $0x98] sm:$0xf] %vm1046, %v956
  %1086 = vst.msk [vmem:[%s6 + $0x9c] sm:$0xf] %vm1046, %v957
  %1087 = vst.msk [vmem:[%s6 + $0xa0] sm:$0xf] %vm1046, %v958
  %1088 = vst.msk [vmem:[%s6 + $0xa4] sm:$0xf] %vm1046, %v959
  %1089 = vst.msk [vmem:[%s6 + $0xa8] sm:$0xf] %vm1046, %v960
  %1090 = vst.msk [vmem:[%s6 + $0xac] sm:$0xf] %vm1046, %v961
  %1091 = vst.msk [vmem:[%s6 + $0xb0] sm:$0xf] %vm1046, %v962
  %1092 = vst.msk [vmem:[%s6 + $0xb4] sm:$0xf] %vm1046, %v963
  %1093 = vst.msk [vmem:[%s6 + $0xb8] sm:$0xf] %vm1046, %v964
  %1094 = vst.msk [vmem:[%s6 + $0xbc] sm:$0xf] %vm1046, %v965
  %1095 = vst.msk [vmem:[%s6 + $0xc0] sm:$0xf] %vm1046, %v966
  %1096 = vst.msk [vmem:[%s6 + $0xc4] sm:$0xf] %vm1046, %v967
  %1097 = vst.msk [vmem:[%s6 + $0xc8] sm:$0xf] %vm1046, %v968
  %1098 = vst.msk [vmem:[%s6 + $0xcc] sm:$0xf] %vm1046, %v969
  %1099 = vst.msk [vmem:[%s6 + $0xd0] sm:$0xf] %vm1046, %v970
  %1100 = vst.msk [vmem:[%s6 + $0xd4] sm:$0xf] %vm1046, %v971
  %1101 = vst.msk [vmem:[%s6 + $0xd8] sm:$0xf] %vm1046, %v972
  %1102 = vst.msk [vmem:[%s6 + $0xdc] sm:$0xf] %vm1046, %v973
  %1103 = vst.msk [vmem:[%s6 + $0xe0] sm:$0xf] %vm1046, %v974
  %1104 = vst.msk [vmem:[%s6 + $0xe4] sm:$0xf] %vm1046, %v975
  %1105 = vst.msk [vmem:[%s6 + $0xe8] sm:$0xf] %vm1046, %v976
  %1106 = vst.msk [vmem:[%s6 + $0xec] sm:$0xf] %vm1046, %v977
  %1107 = vst.msk [vmem:[%s6 + $0xf0] sm:$0xf] %vm1046, %v978
  %1108 = vst.msk [vmem:[%s6 + $0xf4] sm:$0xf] %vm1046, %v979
  %1109 = vst.msk [vmem:[%s6 + $0xf8] sm:$0xf] %vm1046, %v980
  %1110 = vst.msk [vmem:[%s6 + $0xfc] sm:$0xf] %vm1046, %v981
  %v1111 = vld [vmem:[%s5] sm:$0x3]
  %v1113 = vsel %vm433, %v1111, 0
  %1115 = vmatprep.subr.bf16.mxu0 0
  %1116 = vmatpush1.bf16.msra.mxu0 0
  %1117 = vmatprep.subr.bf16.mxu0 0
  %1118 = vmatpush1.bf16.msra.mxu0 0
  %1119 = vmatprep.subr.bf16.mxu0 0
  %1120 = vmatpush1.bf16.msra.mxu0 0
  %1121 = vmatprep.subr.bf16.mxu0 0
  %1122 = vmatpush1.bf16.msra.mxu0 0
  %1123 = vmatprep.subr.bf16.mxu0 0
  %1124 = vmatpush1.bf16.msra.mxu0 0
  %1125 = vmatprep.subr.bf16.mxu0 0
  %1126 = vmatpush1.bf16.msra.mxu0 0
  %1127 = vmatprep.subr.bf16.mxu0 0
  %1128 = vmatpush1.bf16.msra.mxu0 0
  %1129 = vmatprep.subr.bf16.mxu0 0
  %1130 = vmatpush1.bf16.msra.mxu0 %v1113
  %1131 = vmatprep.subr.bf16.mxu0 0
  %1132 = vmatpush2.bf16.msra.mxu0 0
  %1133 = vmatprep.subr.bf16.mxu0 0
  %1134 = vmatpush2.bf16.msra.mxu0 0
  %1135 = vmatprep.subr.bf16.mxu0 0
  %1136 = vmatpush2.bf16.msra.mxu0 0
  %1137 = vmatprep.subr.bf16.mxu0 0
  %1138 = vmatpush2.bf16.msra.mxu0 0
  %1139 = vmatprep.subr.bf16.mxu0 0
  %1140 = vmatpush2.bf16.msra.mxu0 0
  %1141 = vmatprep.subr.bf16.mxu0 0
  %1142 = vmatpush2.bf16.msra.mxu0 0
  %1143 = vmatprep.subr.bf16.mxu0 0
  %1144 = vmatpush2.bf16.msra.mxu0 0
  %1145 = vmatprep.subr.bf16.mxu0 0
  %1146 = vmatpush2.bf16.msra.mxu0 0
  %1147 = vmatprep.mubr.bf16.mxu0 0
  %1148 = vmatmul.mubr.bf16.gmra.mxu0 %v338
  %v1149 = vpop.f32.mrf.mxu0
  %v1150 = vadd.f32 0.0, %v1149
  %v1151 = vpop.f32.mrf.mxu0
  %v1152 = vpop.f32.mrf.mxu0
  %v1153 = vadd.f32 0.0, %v1152
  %v1154 = vpop.f32.mrf.mxu0
  %1155 = vmatprep.mubr.bf16.mxu0 0
  %1156 = vmatmul.mubr.bf16.gmra.mxu0 %v341
  %v1157 = vpop.f32.mrf.mxu0
  %v1158 = vadd.f32 0.0, %v1157
  %v1159 = vpop.f32.mrf.mxu0
  %v1160 = vpop.f32.mrf.mxu0
  %v1161 = vadd.f32 0.0, %v1160
  %v1162 = vpop.f32.mrf.mxu0
  %1163 = vmatprep.mubr.bf16.mxu0 0
  %1164 = vmatmul.mubr.bf16.gmra.mxu0 %v344
  %v1165 = vpop.f32.mrf.mxu0
  %v1166 = vadd.f32 0.0, %v1165
  %v1167 = vpop.f32.mrf.mxu0
  %v1168 = vpop.f32.mrf.mxu0
  %v1169 = vadd.f32 0.0, %v1168
  %v1170 = vpop.f32.mrf.mxu0
  %1171 = vmatprep.mubr.bf16.mxu0 0
  %1172 = vmatmul.mubr.bf16.gmra.mxu0 %v347
  %v1173 = vpop.f32.mrf.mxu0
  %v1174 = vadd.f32 0.0, %v1173
  %v1175 = vpop.f32.mrf.mxu0
  %v1176 = vpop.f32.mrf.mxu0
  %v1177 = vadd.f32 0.0, %v1176
  %v1178 = vpop.f32.mrf.mxu0
  %1179 = vmatprep.mubr.bf16.mxu0 0
  %1180 = vmatmul.mubr.bf16.gmra.mxu0 %v350
  %v1181 = vpop.f32.mrf.mxu0
  %v1182 = vadd.f32 0.0, %v1181
  %v1183 = vpop.f32.mrf.mxu0
  %v1184 = vpop.f32.mrf.mxu0
  %v1185 = vadd.f32 0.0, %v1184
  %v1186 = vpop.f32.mrf.mxu0
  %1187 = vmatprep.mubr.bf16.mxu0 0
  %1188 = vmatmul.mubr.bf16.gmra.mxu0 %v353
  %v1189 = vpop.f32.mrf.mxu0
  %v1190 = vadd.f32 0.0, %v1189
  %v1191 = vpop.f32.mrf.mxu0
  %v1192 = vpop.f32.mrf.mxu0
  %v1193 = vadd.f32 0.0, %v1192
  %v1194 = vpop.f32.mrf.mxu0
  %1195 = vmatprep.mubr.bf16.mxu0 0
  %1196 = vmatmul.mubr.bf16.gmra.mxu0 %v356
  %v1197 = vpop.f32.mrf.mxu0
  %v1198 = vadd.f32 0.0, %v1197
  %v1199 = vpop.f32.mrf.mxu0
  %v1200 = vpop.f32.mrf.mxu0
  %v1201 = vadd.f32 0.0, %v1200
  %v1202 = vpop.f32.mrf.mxu0
  %1203 = vmatprep.mubr.bf16.mxu0 0
  %1204 = vmatmul.mubr.bf16.gmra.mxu0 %v359
  %v1205 = vpop.f32.mrf.mxu0
  %v1206 = vadd.f32 0.0, %v1205
  %v1207 = vpop.f32.mrf.mxu0
  %v1208 = vpop.f32.mrf.mxu0
  %v1209 = vadd.f32 0.0, %v1208
  %v1210 = vpop.f32.mrf.mxu0
  %1211 = vmatprep.mubr.bf16.mxu0 0
  %1212 = vmatmul.mubr.bf16.gmra.mxu0 %v362
  %v1213 = vpop.f32.mrf.mxu0
  %v1214 = vadd.f32 0.0, %v1213
  %v1215 = vpop.f32.mrf.mxu0
  %v1216 = vpop.f32.mrf.mxu0
  %v1217 = vadd.f32 0.0, %v1216
  %v1218 = vpop.f32.mrf.mxu0
  %1219 = vmatprep.mubr.bf16.mxu0 0
  %1220 = vmatmul.mubr.bf16.gmra.mxu0 %v365
  %v1221 = vpop.f32.mrf.mxu0
  %v1222 = vadd.f32 0.0, %v1221
  %v1223 = vpop.f32.mrf.mxu0
  %v1224 = vpop.f32.mrf.mxu0
  %v1225 = vadd.f32 0.0, %v1224
  %v1226 = vpop.f32.mrf.mxu0
  %1227 = vmatprep.mubr.bf16.mxu0 0
  %1228 = vmatmul.mubr.bf16.gmra.mxu0 %v368
  %v1229 = vpop.f32.mrf.mxu0
  %v1230 = vadd.f32 0.0, %v1229
  %v1231 = vpop.f32.mrf.mxu0
  %v1232 = vpop.f32.mrf.mxu0
  %v1233 = vadd.f32 0.0, %v1232
  %v1234 = vpop.f32.mrf.mxu0
  %1235 = vmatprep.mubr.bf16.mxu0 0
  %1236 = vmatmul.mubr.bf16.gmra.mxu0 %v371
  %v1237 = vpop.f32.mrf.mxu0
  %v1238 = vadd.f32 0.0, %v1237
  %v1239 = vpop.f32.mrf.mxu0
  %v1240 = vpop.f32.mrf.mxu0
  %v1241 = vadd.f32 0.0, %v1240
  %v1242 = vpop.f32.mrf.mxu0
  %1243 = vmatprep.mubr.bf16.mxu0 0
  %1244 = vmatmul.mubr.bf16.gmra.mxu0 %v374
  %v1245 = vpop.f32.mrf.mxu0
  %v1246 = vadd.f32 0.0, %v1245
  %v1247 = vpop.f32.mrf.mxu0
  %v1248 = vpop.f32.mrf.mxu0
  %v1249 = vadd.f32 0.0, %v1248
  %v1250 = vpop.f32.mrf.mxu0
  %1251 = vmatprep.mubr.bf16.mxu0 0
  %1252 = vmatmul.mubr.bf16.gmra.mxu0 %v377
  %v1253 = vpop.f32.mrf.mxu0
  %v1254 = vadd.f32 0.0, %v1253
  %v1255 = vpop.f32.mrf.mxu0
  %v1256 = vpop.f32.mrf.mxu0
  %v1257 = vadd.f32 0.0, %v1256
  %v1258 = vpop.f32.mrf.mxu0
  %1259 = vmatprep.mubr.bf16.mxu0 0
  %1260 = vmatmul.mubr.bf16.gmra.mxu0 %v380
  %v1261 = vpop.f32.mrf.mxu0
  %v1262 = vadd.f32 0.0, %v1261
  %v1263 = vpop.f32.mrf.mxu0
  %v1264 = vpop.f32.mrf.mxu0
  %v1265 = vadd.f32 0.0, %v1264
  %v1266 = vpop.f32.mrf.mxu0
  %1267 = vmatprep.mubr.bf16.mxu0 0
  %1268 = vmatmul.mubr.bf16.gmra.mxu0 %v383
  %v1269 = vpop.f32.mrf.mxu0
  %v1270 = vadd.f32 0.0, %v1269
  %v1271 = vpop.f32.mrf.mxu0
  %v1272 = vpop.f32.mrf.mxu0
  %v1273 = vadd.f32 0.0, %v1272
  %v1274 = vpop.f32.mrf.mxu0
  %1275 = vmatprep.mubr.bf16.mxu0 0
  %1276 = vmatmul.mubr.bf16.gmra.mxu0 %v386
  %v1277 = vpop.f32.mrf.mxu0
  %v1278 = vadd.f32 0.0, %v1277
  %v1279 = vpop.f32.mrf.mxu0
  %v1280 = vpop.f32.mrf.mxu0
  %v1281 = vadd.f32 0.0, %v1280
  %v1282 = vpop.f32.mrf.mxu0
  %1283 = vmatprep.mubr.bf16.mxu0 0
  %1284 = vmatmul.mubr.bf16.gmra.mxu0 %v389
  %v1285 = vpop.f32.mrf.mxu0
  %v1286 = vadd.f32 0.0, %v1285
  %v1287 = vpop.f32.mrf.mxu0
  %v1288 = vpop.f32.mrf.mxu0
  %v1289 = vadd.f32 0.0, %v1288
  %v1290 = vpop.f32.mrf.mxu0
  %1291 = vmatprep.mubr.bf16.mxu0 0
  %1292 = vmatmul.mubr.bf16.gmra.mxu0 %v392
  %v1293 = vpop.f32.mrf.mxu0
  %v1294 = vadd.f32 0.0, %v1293
  %v1295 = vpop.f32.mrf.mxu0
  %v1296 = vpop.f32.mrf.mxu0
  %v1297 = vadd.f32 0.0, %v1296
  %v1298 = vpop.f32.mrf.mxu0
  %1299 = vmatprep.mubr.bf16.mxu0 0
  %1300 = vmatmul.mubr.bf16.gmra.mxu0 %v395
  %v1301 = vpop.f32.mrf.mxu0
  %v1302 = vadd.f32 0.0, %v1301
  %v1303 = vpop.f32.mrf.mxu0
  %v1304 = vpop.f32.mrf.mxu0
  %v1305 = vadd.f32 0.0, %v1304
  %v1306 = vpop.f32.mrf.mxu0
  %1307 = vmatprep.mubr.bf16.mxu0 0
  %1308 = vmatmul.mubr.bf16.gmra.mxu0 %v398
  %v1309 = vpop.f32.mrf.mxu0
  %v1310 = vadd.f32 0.0, %v1309
  %v1311 = vpop.f32.mrf.mxu0
  %v1312 = vpop.f32.mrf.mxu0
  %v1313 = vadd.f32 0.0, %v1312
  %v1314 = vpop.f32.mrf.mxu0
  %1315 = vmatprep.mubr.bf16.mxu0 0
  %1316 = vmatmul.mubr.bf16.gmra.mxu0 %v401
  %v1317 = vpop.f32.mrf.mxu0
  %v1318 = vadd.f32 0.0, %v1317
  %v1319 = vpop.f32.mrf.mxu0
  %v1320 = vpop.f32.mrf.mxu0
  %v1321 = vadd.f32 0.0, %v1320
  %v1322 = vpop.f32.mrf.mxu0
  %1323 = vmatprep.mubr.bf16.mxu0 0
  %1324 = vmatmul.mubr.bf16.gmra.mxu0 %v404
  %v1325 = vpop.f32.mrf.mxu0
  %v1326 = vadd.f32 0.0, %v1325
  %v1327 = vpop.f32.mrf.mxu0
  %v1328 = vpop.f32.mrf.mxu0
  %v1329 = vadd.f32 0.0, %v1328
  %v1330 = vpop.f32.mrf.mxu0
  %1331 = vmatprep.mubr.bf16.mxu0 0
  %1332 = vmatmul.mubr.bf16.gmra.mxu0 %v407
  %v1333 = vpop.f32.mrf.mxu0
  %v1334 = vadd.f32 0.0, %v1333
  %v1335 = vpop.f32.mrf.mxu0
  %v1336 = vpop.f32.mrf.mxu0
  %v1337 = vadd.f32 0.0, %v1336
  %v1338 = vpop.f32.mrf.mxu0
  %1339 = vmatprep.mubr.bf16.mxu0 0
  %1340 = vmatmul.mubr.bf16.gmra.mxu0 %v410
  %v1341 = vpop.f32.mrf.mxu0
  %v1342 = vadd.f32 0.0, %v1341
  %v1343 = vpop.f32.mrf.mxu0
  %v1344 = vpop.f32.mrf.mxu0
  %v1345 = vadd.f32 0.0, %v1344
  %v1346 = vpop.f32.mrf.mxu0
  %1347 = vmatprep.mubr.bf16.mxu0 0
  %1348 = vmatmul.mubr.bf16.gmra.mxu0 %v413
  %v1349 = vpop.f32.mrf.mxu0
  %v1350 = vadd.f32 0.0, %v1349
  %v1351 = vpop.f32.mrf.mxu0
  %v1352 = vpop.f32.mrf.mxu0
  %v1353 = vadd.f32 0.0, %v1352
  %v1354 = vpop.f32.mrf.mxu0
  %1355 = vmatprep.mubr.bf16.mxu0 0
  %1356 = vmatmul.mubr.bf16.gmra.mxu0 %v416
  %v1357 = vpop.f32.mrf.mxu0
  %v1358 = vadd.f32 0.0, %v1357
  %v1359 = vpop.f32.mrf.mxu0
  %v1360 = vpop.f32.mrf.mxu0
  %v1361 = vadd.f32 0.0, %v1360
  %v1362 = vpop.f32.mrf.mxu0
  %1363 = vmatprep.mubr.bf16.mxu0 0
  %1364 = vmatmul.mubr.bf16.gmra.mxu0 %v419
  %v1365 = vpop.f32.mrf.mxu0
  %v1366 = vadd.f32 0.0, %v1365
  %v1367 = vpop.f32.mrf.mxu0
  %v1368 = vpop.f32.mrf.mxu0
  %v1369 = vadd.f32 0.0, %v1368
  %v1370 = vpop.f32.mrf.mxu0
  %1371 = vmatprep.mubr.bf16.mxu0 0
  %1372 = vmatmul.mubr.bf16.gmra.mxu0 %v422
  %v1373 = vpop.f32.mrf.mxu0
  %v1374 = vadd.f32 0.0, %v1373
  %v1375 = vpop.f32.mrf.mxu0
  %v1376 = vpop.f32.mrf.mxu0
  %v1377 = vadd.f32 0.0, %v1376
  %v1378 = vpop.f32.mrf.mxu0
  %1379 = vmatprep.mubr.bf16.mxu0 0
  %1380 = vmatmul.mubr.bf16.gmra.mxu0 %v425
  %v1381 = vpop.f32.mrf.mxu0
  %v1382 = vadd.f32 0.0, %v1381
  %v1383 = vpop.f32.mrf.mxu0
  %v1384 = vpop.f32.mrf.mxu0
  %v1385 = vadd.f32 0.0, %v1384
  %v1386 = vpop.f32.mrf.mxu0
  %1387 = vmatprep.mubr.bf16.mxu0 0
  %1388 = vmatmul.mubr.bf16.gmra.mxu0 %v428
  %v1389 = vpop.f32.mrf.mxu0
  %v1390 = vadd.f32 0.0, %v1389
  %v1391 = vpop.f32.mrf.mxu0
  %v1392 = vpop.f32.mrf.mxu0
  %v1393 = vadd.f32 0.0, %v1392
  %v1394 = vpop.f32.mrf.mxu0
  %1395 = vmatprep.mubr.bf16.mxu0 0
  %1396 = vmatmul.mubr.bf16.gmra.mxu0 %v431
  %v1397 = vpop.f32.mrf.mxu0
  %v1398 = vadd.f32 0.0, %v1397
  %v1399 = vpop.f32.mrf.mxu0
  %v1400 = vpop.f32.mrf.mxu0
  %v1401 = vadd.f32 0.0, %v1400
  %v1402 = vpop.f32.mrf.mxu0
  %1403 = vdwg.mxu0
  %vm1404 = vcmask 130048
  %1405 = vst.msk [vmem:[%s7] sm:$0xff] %vm1404, %v1150
  %1406 = vst.msk [vmem:[%s7 + $0x8] sm:$0xff] %vm1404, %v1153
  %1407 = vst.msk [vmem:[%s7 + $0x10] sm:$0xff] %vm1404, %v1158
  %1408 = vst.msk [vmem:[%s7 + $0x18] sm:$0xff] %vm1404, %v1161
  %1409 = vst.msk [vmem:[%s7 + $0x20] sm:$0xff] %vm1404, %v1166
  %1410 = vst.msk [vmem:[%s7 + $0x28] sm:$0xff] %vm1404, %v1169
  %1411 = vst.msk [vmem:[%s7 + $0x30] sm:$0xff] %vm1404, %v1174
  %1412 = vst.msk [vmem:[%s7 + $0x38] sm:$0xff] %vm1404, %v1177
  %1413 = vst.msk [vmem:[%s7 + $0x40] sm:$0xff] %vm1404, %v1182
  %1414 = vst.msk [vmem:[%s7 + $0x48] sm:$0xff] %vm1404, %v1185
  %1415 = vst.msk [vmem:[%s7 + $0x50] sm:$0xff] %vm1404, %v1190
  %1416 = vst.msk [vmem:[%s7 + $0x58] sm:$0xff] %vm1404, %v1193
  %1417 = vst.msk [vmem:[%s7 + $0x60] sm:$0xff] %vm1404, %v1198
  %1418 = vst.msk [vmem:[%s7 + $0x68] sm:$0xff] %vm1404, %v1201
  %1419 = vst.msk [vmem:[%s7 + $0x70] sm:$0xff] %vm1404, %v1206
  %1420 = vst.msk [vmem:[%s7 + $0x78] sm:$0xff] %vm1404, %v1209
  %1421 = vst.msk [vmem:[%s7 + $0x80] sm:$0xff] %vm1404, %v1214
  %1422 = vst.msk [vmem:[%s7 + $0x88] sm:$0xff] %vm1404, %v1217
  %1423 = vst.msk [vmem:[%s7 + $0x90] sm:$0xff] %vm1404, %v1222
  %1424 = vst.msk [vmem:[%s7 + $0x98] sm:$0xff] %vm1404, %v1225
  %1425 = vst.msk [vmem:[%s7 + $0xa0] sm:$0xff] %vm1404, %v1230
  %1426 = vst.msk [vmem:[%s7 + $0xa8] sm:$0xff] %vm1404, %v1233
  %1427 = vst.msk [vmem:[%s7 + $0xb0] sm:$0xff] %vm1404, %v1238
  %1428 = vst.msk [vmem:[%s7 + $0xb8] sm:$0xff] %vm1404, %v1241
  %1429 = vst.msk [vmem:[%s7 + $0xc0] sm:$0xff] %vm1404, %v1246
  %1430 = vst.msk [vmem:[%s7 + $0xc8] sm:$0xff] %vm1404, %v1249
  %1431 = vst.msk [vmem:[%s7 + $0xd0] sm:$0xff] %vm1404, %v1254
  %1432 = vst.msk [vmem:[%s7 + $0xd8] sm:$0xff] %vm1404, %v1257
  %1433 = vst.msk [vmem:[%s7 + $0xe0] sm:$0xff] %vm1404, %v1262
  %1434 = vst.msk [vmem:[%s7 + $0xe8] sm:$0xff] %vm1404, %v1265
  %1435 = vst.msk [vmem:[%s7 + $0xf0] sm:$0xff] %vm1404, %v1270
  %1436 = vst.msk [vmem:[%s7 + $0xf8] sm:$0xff] %vm1404, %v1273
  %1437 = vst.msk [vmem:[%s7 + $0x100] sm:$0xff] %vm1404, %v1278
  %1438 = vst.msk [vmem:[%s7 + $0x108] sm:$0xff] %vm1404, %v1281
  %1439 = vst.msk [vmem:[%s7 + $0x110] sm:$0xff] %vm1404, %v1286
  %1440 = vst.msk [vmem:[%s7 + $0x118] sm:$0xff] %vm1404, %v1289
  %1441 = vst.msk [vmem:[%s7 + $0x120] sm:$0xff] %vm1404, %v1294
  %1442 = vst.msk [vmem:[%s7 + $0x128] sm:$0xff] %vm1404, %v1297
  %1443 = vst.msk [vmem:[%s7 + $0x130] sm:$0xff] %vm1404, %v1302
  %1444 = vst.msk [vmem:[%s7 + $0x138] sm:$0xff] %vm1404, %v1305
  %1445 = vst.msk [vmem:[%s7 + $0x140] sm:$0xff] %vm1404, %v1310
  %1446 = vst.msk [vmem:[%s7 + $0x148] sm:$0xff] %vm1404, %v1313
  %1447 = vst.msk [vmem:[%s7 + $0x150] sm:$0xff] %vm1404, %v1318
  %1448 = vst.msk [vmem:[%s7 + $0x158] sm:$0xff] %vm1404, %v1321
  %1449 = vst.msk [vmem:[%s7 + $0x160] sm:$0xff] %vm1404, %v1326
  %1450 = vst.msk [vmem:[%s7 + $0x168] sm:$0xff] %vm1404, %v1329
  %1451 = vst.msk [vmem:[%s7 + $0x170] sm:$0xff] %vm1404, %v1334
  %1452 = vst.msk [vmem:[%s7 + $0x178] sm:$0xff] %vm1404, %v1337
  %1453 = vst.msk [vmem:[%s7 + $0x180] sm:$0xff] %vm1404, %v1342
  %1454 = vst.msk [vmem:[%s7 + $0x188] sm:$0xff] %vm1404, %v1345
  %1455 = vst.msk [vmem:[%s7 + $0x190] sm:$0xff] %vm1404, %v1350
  %1456 = vst.msk [vmem:[%s7 + $0x198] sm:$0xff] %vm1404, %v1353
  %1457 = vst.msk [vmem:[%s7 + $0x1a0] sm:$0xff] %vm1404, %v1358
  %1458 = vst.msk [vmem:[%s7 + $0x1a8] sm:$0xff] %vm1404, %v1361
  %1459 = vst.msk [vmem:[%s7 + $0x1b0] sm:$0xff] %vm1404, %v1366
  %1460 = vst.msk [vmem:[%s7 + $0x1b8] sm:$0xff] %vm1404, %v1369
  %1461 = vst.msk [vmem:[%s7 + $0x1c0] sm:$0xff] %vm1404, %v1374
  %1462 = vst.msk [vmem:[%s7 + $0x1c8] sm:$0xff] %vm1404, %v1377
  %1463 = vst.msk [vmem:[%s7 + $0x1d0] sm:$0xff] %vm1404, %v1382
  %1464 = vst.msk [vmem:[%s7 + $0x1d8] sm:$0xff] %vm1404, %v1385
  %1465 = vst.msk [vmem:[%s7 + $0x1e0] sm:$0xff] %vm1404, %v1390
  %1466 = vst.msk [vmem:[%s7 + $0x1e8] sm:$0xff] %vm1404, %v1393
  %1467 = vst.msk [vmem:[%s7 + $0x1f0] sm:$0xff] %vm1404, %v1398
  %1468 = vst.msk [vmem:[%s7 + $0x1f8] sm:$0xff] %vm1404, %v1401
  // Predicated region
  $region26: #{tpu_custom_call.1} parent=0 // pred_check
    _
  $region27: #{tpu_custom_call.1} parent=0 // pred_check_branch
    %1470 = sbr.rel (0) target = $region29
  $region28: #{tpu_custom_call.1} parent=0 // pred_region
    _
  $region29: #{tpu_custom_call.1} parent=0 // pred_fallthru
    _
  // Predicated region
  $region30: #{tpu_custom_call.1} parent=0 // pred_check
    _
  $region31: #{tpu_custom_call.1} parent=0 // pred_check_branch
    %1472 = sbr.rel (0) target = $region33
  $region32: #{tpu_custom_call.1} parent=0 // pred_region
    _
  $region33: #{tpu_custom_call.1} parent=0 // pred_fallthru
    _
  // Predicated region
  $region34: #{tpu_custom_call.1} parent=0 // pred_check
    _
  $region35: #{tpu_custom_call.1} parent=0 // pred_check_branch
    %1474 = sbr.rel (0) target = $region37
  $region36: #{tpu_custom_call.1} parent=0 // pred_region
    _
  $region37: #{tpu_custom_call.1} parent=0 // pred_fallthru
    _
  // Predicated region
  $region38: #{tpu_custom_call.1} parent=0 // pred_check
    _
  $region39: #{tpu_custom_call.1} parent=0 // pred_check_branch
    %1476 = sbr.rel (0) target = $region41
  $region40: #{tpu_custom_call.1} parent=0 // pred_region
    _
  $region41: #{tpu_custom_call.1} parent=0 // pred_fallthru
    _

</llo_original>
